<compile_context>
chip_gen: v7x
topology: tpu7x:2x2x1
jax: 0.10.0
libtpu: 0.0.40
codegen_flags: <defaults>
</compile_context>

<pallas_src>
import functools
import math

import jax
import jax.numpy as jnp
from jax import lax
from jax.experimental import pallas as pl
from jax.experimental.pallas import tpu as pltpu


def _layer_norm(x, gamma, beta, eps=1e-5):
    mu = jnp.mean(x, axis=-1, keepdims=True)
    var = jnp.mean((x - mu) ** 2, axis=-1, keepdims=True)
    return (x - mu) * lax.rsqrt(var + eps) * gamma + beta


def encoder_kernel(x_ref, bias_ref,
                   wqkv_ref, bqkv_ref, wo_ref, bo_ref,
                   w1_ref, b1_ref, w2_ref, b2_ref,
                   g1_ref, be1_ref, g2_ref, be2_ref,
                   o_ref, ctx_ref, *, nhead):
    """One grid step == one TransformerEncoderLayer applied to one batch block (NB, S, E).

    Grid = (batch_blocks ["parallel"], layers ["arbitrary"]).  The output block (constant
    index across the layer axis) is the VMEM-resident activation carrier between layers.
    """
    l = pl.program_id(1)

    # Layer 0: load the input activation into the resident output block.
    @pl.when(l == 0)
    def _():
        o_ref[...] = x_ref[...]

    x = o_ref[...]                               # (NB, S, E) f32
    NB, S, E = x.shape
    R = NB * S
    hd = E // nhead
    scale = 1.0 / math.sqrt(hd)

    x2d = x.reshape(R, E)                        # contiguous collapse of leading dims (free)

    # ---- self-attention ----------------------------------------------------
    qkv = jnp.dot(x2d.astype(jnp.bfloat16), wqkv_ref[0],
                  preferred_element_type=jnp.float32) + bqkv_ref[0]       # (R, 3E) f32
    # bf16 operands for the score / context matmuls (MXU-native), f32 accumulation.
    q = (qkv[:, :E] * scale).astype(jnp.bfloat16).reshape(NB, S, E)       # scale folded once
    k = qkv[:, E:2 * E].astype(jnp.bfloat16).reshape(NB, S, E)
    v = qkv[:, 2 * E:].astype(jnp.bfloat16).reshape(NB, S, E)

    bias = bias_ref[...]                         # (NB, 1, S) additive key-padding bias

    # Small static head loop; per-head temporaries are only (NB, S, S) / (NB, S, hd) and each
    # head's context is stored straight to scratch (bounded live ranges, no lane concat).
    for h in range(nhead):
        sl = slice(h * hd, (h + 1) * hd)
        qh, kh, vh = q[:, :, sl], k[:, :, sl], v[:, :, sl]
        s = jnp.einsum('bqd,bkd->bqk', qh, kh,
                       preferred_element_type=jnp.float32) + bias          # (NB, S, S)
        s = s - jnp.max(s, axis=-1, keepdims=True)
        p = jnp.exp(s)
        # NOTE: a fully key-padded row gives 0/0 = NaN, matching PyTorch behavior.
        p = p * pl.reciprocal(jnp.sum(p, axis=-1, keepdims=True), approx=True)
        ctxh = jnp.einsum('bqk,bkd->bqd', p.astype(jnp.bfloat16), vh,
                          preferred_element_type=jnp.float32)              # (NB, S, hd)
        ctx_ref[:, sl] = ctxh.reshape(R, hd).astype(jnp.bfloat16)

    # Single output projection with full K = E contraction.
    attn = jnp.dot(ctx_ref[...], wo_ref[0],
                   preferred_element_type=jnp.float32) + bo_ref[0]         # (R, E) f32

    # residual + norm1 (post-norm), f32
    x1 = _layer_norm(x2d + attn, g1_ref[0], be1_ref[0])

    # ---- feed-forward (ReLU) -----------------------------------------------
    h1 = jnp.dot(x1.astype(jnp.bfloat16), w1_ref[0],
                 preferred_element_type=jnp.float32) + b1_ref[0]
    h1 = jnp.maximum(h1, 0.0)
    ff = jnp.dot(h1.astype(jnp.bfloat16), w2_ref[0],
                 preferred_element_type=jnp.float32) + b2_ref[0]

    # residual + norm2
    x2 = _layer_norm(x1 + ff, g2_ref[0], be2_ref[0])
    o_ref[...] = x2.reshape(NB, S, E).astype(o_ref.dtype)   # activation for next layer / output


def encoder_forward(x_sne, src_key_padding_mask, params, nhead, batch_block=1):
    """x_sne: (S, N, E) float32 (PyTorch layout); src_key_padding_mask: (N, S) bool."""
    S, N, E = x_sne.shape
    L = params["wqkv"].shape[0]
    F = params["w1"].shape[-1]
    NB = batch_block
    assert N % NB == 0, "batch_block must divide the batch size"
    rows = NB * S

    # Single wrapper transpose to batch-major; everything downstream is per-batch.
    x_nse = jnp.transpose(x_sne.astype(jnp.float32), (1, 0, 2))            # (N, S, E)

    # Tiny per-batch additive key-padding bias (N, 1, S): 0 = attend, -inf = padded key.
    kp_bias = jnp.where(src_key_padding_mask, -jnp.inf, 0.0).astype(jnp.float32)[:, None, :]

    def bspec(shape):   # per-batch-block input, constant across the layer axis
        return pl.BlockSpec(shape, lambda b, l: (b, 0, 0))

    def lspec(shape):   # per-layer weight, constant across the batch axis (auto-prefetched)
        return pl.BlockSpec((1,) + tuple(shape), lambda b, l: (l, 0, 0))

    in_specs = [
        bspec((NB, S, E)),            # x
        bspec((NB, 1, S)),            # key-padding bias
        lspec((E, 3 * E)),            # wqkv   (bf16)
        lspec((1, 3 * E)),            # bqkv
        lspec((E, E)),                # wo     (bf16)
        lspec((1, E)),                # bo
        lspec((E, F)),                # w1     (bf16)
        lspec((1, F)),                # b1
        lspec((F, E)),                # w2     (bf16)
        lspec((1, E)),                # b2
        lspec((1, E)),                # ln1 gamma
        lspec((1, E)),                # ln1 beta
        lspec((1, E)),                # ln2 gamma
        lspec((1, E)),                # ln2 beta
    ]

    # Explicit scoped-VMEM budget: resident activation + double-buffered per-layer weights
    # + largest f32 intermediates, with headroom (floored at the usual default).
    w_bytes = 2 * 2 * (E * 3 * E + E * E + E * F + F * E)          # bf16 weights, 2 buffers
    a_bytes = 2 * 4 * (2 * rows * E + NB * S)                      # x + out blocks + bias
    i_bytes = 4 * (rows * 3 * E + NB * S * S + rows * F) + 2 * rows * E
    vmem_limit = min(max(int(1.5 * (w_bytes + a_bytes + i_bytes)), 32 << 20), 100 << 20)

    out_nse = pl.pallas_call(
        functools.partial(encoder_kernel, nhead=nhead),
        out_shape=jax.ShapeDtypeStruct((N, S, E), jnp.float32),
        grid_spec=pltpu.PrefetchScalarGridSpec(
            num_scalar_prefetch=0,
            grid=(N // NB, L),                    # batch blocks (parallel) x layers (sequential)
            in_specs=in_specs,
            out_specs=pl.BlockSpec((NB, S, E), lambda b, l: (b, 0, 0)),
            scratch_shapes=[pltpu.VMEM((rows, E), jnp.bfloat16)],   # head-assembled context
        ),
        compiler_params=pltpu.CompilerParams(
            dimension_semantics=("parallel", "arbitrary"),
            vmem_limit_bytes=vmem_limit),
    )(
        x_nse, kp_bias,
        params["wqkv"], params["bqkv"], params["wo"], params["bo"],
        params["w1"], params["b1"], params["w2"], params["b2"],
        params["g1"], params["be1"], params["g2"], params["be2"],
    )
    return jnp.transpose(out_nse, (1, 0, 2))     # back to PyTorch (S, N, E) layout


def init_encoder_params(key, d_model, nhead, dim_ff, nlayers_enc):
    """Deterministic synthetic parameters, stacked over layers (leading L axis).

    Matmul weights are stored pre-transposed (in, out) and in bf16 (MXU-native);
    biases and LayerNorm parameters stay f32.
    """
    E, F, L = d_model, dim_ff, nlayers_enc
    k0, k1, k2, k3 = jax.random.split(key, 4)
    scale = 0.02
    return dict(
        wqkv=(scale * jax.random.normal(k0, (L, E, 3 * E))).astype(jnp.bfloat16),
        bqkv=jnp.zeros((L, 1, 3 * E), jnp.float32),
        wo=(scale * jax.random.normal(k1, (L, E, E))).astype(jnp.bfloat16),
        bo=jnp.zeros((L, 1, E), jnp.float32),
        w1=(scale * jax.random.normal(k2, (L, E, F))).astype(jnp.bfloat16),
        b1=jnp.zeros((L, 1, F), jnp.float32),
        w2=(scale * jax.random.normal(k3, (L, F, E))).astype(jnp.bfloat16),
        b2=jnp.zeros((L, 1, E), jnp.float32),
        g1=jnp.ones((L, 1, E), jnp.float32),
        be1=jnp.zeros((L, 1, E), jnp.float32),
        g2=jnp.ones((L, 1, E), jnp.float32),
        be2=jnp.zeros((L, 1, E), jnp.float32),
    )


if __name__ == "__main__":
    # Small shapes consistent with the module: seq=8, batch=2, d_model=32,
    # nhead=4, dim_ff=64, nlayers_enc=2, dropout=0.0 (identity in forward).
    S, N, E = 8, 2, 32
    NHEAD, DIM_FF, NLAYERS = 4, 64, 2

    key = jax.random.PRNGKey(0)
    kx, kp = jax.random.split(key)
    x = jax.random.normal(kx, (S, N, E), dtype=jnp.float32)   # (S, N, E) PyTorch layout

    # key padding mask: last two positions of batch element 1 are padded
    src_key_padding_mask = jnp.zeros((N, S), dtype=bool)
    src_key_padding_mask = src_key_padding_mask.at[1, -2:].set(True)

    params = init_encoder_params(kp, E, NHEAD, DIM_FF, NLAYERS)

    out = encoder_forward(x, src_key_padding_mask, params, NHEAD, batch_block=1)
    out = jax.block_until_ready(out)
    assert out.shape == (S, N, E)
    assert bool(jnp.all(jnp.isfinite(out)))
    print("KERNEL_OK")
</pallas_src>

<mosaic_0001>
module attributes {stable_mosaic.version = 11 : i64} {
  func.func @encoder_kernel(%arg0: i32, %arg1: i32, %arg2: memref<1x8x32xf32, #tpu.memory_space<vmem>>, %arg3: memref<1x1x8xf32, #tpu.memory_space<vmem>>, %arg4: memref<1x32x96xbf16, #tpu.memory_space<vmem>>, %arg5: memref<1x1x96xf32, #tpu.memory_space<vmem>>, %arg6: memref<1x32x32xbf16, #tpu.memory_space<vmem>>, %arg7: memref<1x1x32xf32, #tpu.memory_space<vmem>>, %arg8: memref<1x32x64xbf16, #tpu.memory_space<vmem>>, %arg9: memref<1x1x64xf32, #tpu.memory_space<vmem>>, %arg10: memref<1x64x32xbf16, #tpu.memory_space<vmem>>, %arg11: memref<1x1x32xf32, #tpu.memory_space<vmem>>, %arg12: memref<1x1x32xf32, #tpu.memory_space<vmem>>, %arg13: memref<1x1x32xf32, #tpu.memory_space<vmem>>, %arg14: memref<1x1x32xf32, #tpu.memory_space<vmem>>, %arg15: memref<1x1x32xf32, #tpu.memory_space<vmem>>, %arg16: memref<1x8x32xf32, #tpu.memory_space<vmem>>, %arg17: memref<8x32xbf16, #tpu.memory_space<vmem>>) attributes {dimension_semantics = [#tpu.dimension_semantics<parallel>, #tpu.dimension_semantics<arbitrary>], iteration_bounds = array<i64: 2, 2>, scalar_prefetch = 0 : i64, scratch_operands = 1 : i64, tpu.core_type = #tpu.core_type<tc>, window_params = [{transform_indices = @transform_0, window_bounds = array<i64: 1, 8, 32>}, {transform_indices = @transform_1, window_bounds = array<i64: 1, 1, 8>}, {transform_indices = @transform_2, window_bounds = array<i64: 1, 32, 96>}, {transform_indices = @transform_3, window_bounds = array<i64: 1, 1, 96>}, {transform_indices = @transform_4, window_bounds = array<i64: 1, 32, 32>}, {transform_indices = @transform_5, window_bounds = array<i64: 1, 1, 32>}, {transform_indices = @transform_6, window_bounds = array<i64: 1, 32, 64>}, {transform_indices = @transform_7, window_bounds = array<i64: 1, 1, 64>}, {transform_indices = @transform_8, window_bounds = array<i64: 1, 64, 32>}, {transform_indices = @transform_9, window_bounds = array<i64: 1, 1, 32>}, {transform_indices = @transform_10, window_bounds = array<i64: 1, 1, 32>}, {transform_indices = @transform_11, window_bounds = array<i64: 1, 1, 32>}, {transform_indices = @transform_12, window_bounds = array<i64: 1, 1, 32>}, {transform_indices = @transform_13, window_bounds = array<i64: 1, 1, 32>}, {transform_indices = @transform_14, window_bounds = array<i64: 1, 8, 32>}]} {
    %c0_i32 = arith.constant 0 : i32
    %0 = arith.cmpi eq, %arg1, %c0_i32 : i32
    %1 = arith.extui %0 : i1 to i32
    %c0_i32_0 = arith.constant 0 : i32
    %2 = arith.cmpi ne, %1, %c0_i32_0 : i32
    scf.if %2 {
      %c0_83 = arith.constant 0 : index
      %c0_84 = arith.constant 0 : index
      %c0_85 = arith.constant 0 : index
      %191 = vector.load %arg2[%c0_83, %c0_84, %c0_85] : memref<1x8x32xf32, #tpu.memory_space<vmem>>, vector<1x8x32xf32>
      %c0_86 = arith.constant 0 : index
      %c0_87 = arith.constant 0 : index
      %c0_88 = arith.constant 0 : index
      %192 = vector.load %arg16[%c0_86, %c0_87, %c0_88] : memref<1x8x32xf32, #tpu.memory_space<vmem>>, vector<1x8x32xf32>
      tpu.vector_store %arg16[%c0_86, %c0_87, %c0_88], %191 {strides = array<i32>} : memref<1x8x32xf32, #tpu.memory_space<vmem>>, vector<1x8x32xf32>,
    } else {
    }
    %c0 = arith.constant 0 : index
    %c0_1 = arith.constant 0 : index
    %c0_2 = arith.constant 0 : index
    %3 = vector.load %arg16[%c0, %c0_1, %c0_2] : memref<1x8x32xf32, #tpu.memory_space<vmem>>, vector<1x8x32xf32>
    %4 = vector.shape_cast %3 : vector<1x8x32xf32> to vector<8x32xf32>
    %5 = arith.truncf %4 : vector<8x32xf32> to vector<8x32xbf16>
    %c0_3 = arith.constant 0 : index
    %c0_4 = arith.constant 0 : index
    %c0_5 = arith.constant 0 : index
    %6 = vector.load %arg4[%c0_3, %c0_4, %c0_5] : memref<1x32x96xbf16, #tpu.memory_space<vmem>>, vector<1x32x96xbf16>
    %7 = vector.shape_cast %6 : vector<1x32x96xbf16> to vector<32x96xbf16>
    %cst = arith.constant dense<0.000000e+00> : vector<8x96xf32>
    %8 = tpu.matmul %5, %7, %cst {dimension_numbers = #tpu.dot_dimension_numbers<[1], [0], [0], [1], [0, 0, 1, 1], [], []>} : vector<8x32xbf16>, vector<32x96xbf16>, vector<8x96xf32> -> vector<8x96xf32>
    %c0_6 = arith.constant 0 : index
    %c0_7 = arith.constant 0 : index
    %c0_8 = arith.constant 0 : index
    %9 = vector.load %arg5[%c0_6, %c0_7, %c0_8] : memref<1x1x96xf32, #tpu.memory_space<vmem>>, vector<1x1x96xf32>
    %10 = vector.shape_cast %9 : vector<1x1x96xf32> to vector<1x96xf32>
    %11 = vector.broadcast %10 : vector<1x96xf32> to vector<8x96xf32>
    %12 = arith.addf %8, %11 : vector<8x96xf32>
    %13 = vector.extract_strided_slice %12 {offsets = [0, 0], sizes = [8, 32], strides = [1, 1]} : vector<8x96xf32> to vector<8x32xf32>
    %cst_9 = arith.constant 0.353553385 : f32
    %14 = vector.broadcast %cst_9 : f32 to vector<8x32xf32>
    %15 = arith.mulf %13, %14 : vector<8x32xf32>
    %16 = arith.truncf %15 : vector<8x32xf32> to vector<8x32xbf16>
    %17 = vector.shape_cast %16 : vector<8x32xbf16> to vector<1x8x32xbf16>
    %18 = vector.extract_strided_slice %12 {offsets = [0, 32], sizes = [8, 32], strides = [1, 1]} : vector<8x96xf32> to vector<8x32xf32>
    %19 = arith.truncf %18 : vector<8x32xf32> to vector<8x32xbf16>
    %20 = vector.shape_cast %19 : vector<8x32xbf16> to vector<1x8x32xbf16>
    %21 = vector.extract_strided_slice %12 {offsets = [0, 64], sizes = [8, 32], strides = [1, 1]} : vector<8x96xf32> to vector<8x32xf32>
    %22 = arith.truncf %21 : vector<8x32xf32> to vector<8x32xbf16>
    %23 = vector.shape_cast %22 : vector<8x32xbf16> to vector<1x8x32xbf16>
    %c0_10 = arith.constant 0 : index
    %c0_11 = arith.constant 0 : index
    %c0_12 = arith.constant 0 : index
    %24 = vector.load %arg3[%c0_10, %c0_11, %c0_12] : memref<1x1x8xf32, #tpu.memory_space<vmem>>, vector<1x1x8xf32>
    %25 = vector.extract_strided_slice %17 {offsets = [0, 0, 0], sizes = [1, 8, 8], strides = [1, 1, 1]} : vector<1x8x32xbf16> to vector<1x8x8xbf16>
    %26 = vector.extract_strided_slice %20 {offsets = [0, 0, 0], sizes = [1, 8, 8], strides = [1, 1, 1]} : vector<1x8x32xbf16> to vector<1x8x8xbf16>
    %27 = vector.extract_strided_slice %23 {offsets = [0, 0, 0], sizes = [1, 8, 8], strides = [1, 1, 1]} : vector<1x8x32xbf16> to vector<1x8x8xbf16>
    "tpu.trace_start"() <{level = 10 : i32, message = "bqd,bkd->bqk"}> : () -> ()
    %cst_13 = arith.constant dense<0.000000e+00> : vector<1x8x8xf32>
    %28 = tpu.matmul %25, %26, %cst_13 {dimension_numbers = #tpu.dot_dimension_numbers<[2], [2], [1], [1], [0, 0, 0, 1, 1, 1], [0], [0]>} : vector<1x8x8xbf16>, vector<1x8x8xbf16>, vector<1x8x8xf32> -> vector<1x8x8xf32>
    "tpu.trace_stop"() : () -> ()
    %29 = vector.broadcast %24 : vector<1x1x8xf32> to vector<1x8x8xf32>
    %30 = arith.addf %28, %29 : vector<1x8x8xf32>
    %cst_14 = arith.constant dense<0xFF800000> : vector<1x8xf32>
    %31 = vector.multi_reduction <maximumf>, %30, %cst_14 [2] : vector<1x8x8xf32> to vector<1x8xf32>
    %32 = vector.shape_cast %31 : vector<1x8xf32> to vector<1x8x1xf32>
    %33 = vector.broadcast %32 : vector<1x8x1xf32> to vector<1x8x8xf32>
    %34 = arith.subf %30, %33 : vector<1x8x8xf32>
    %35 = math.exp %34 : vector<1x8x8xf32>
    %cst_15 = arith.constant dense<0.000000e+00> : vector<1x8xf32>
    %36 = vector.multi_reduction <add>, %35, %cst_15 [2] : vector<1x8x8xf32> to vector<1x8xf32>
    %37 = vector.shape_cast %36 : vector<1x8xf32> to vector<1x8x1xf32>
    %38 = tpu.reciprocal %37 {approx = true} : vector<1x8x1xf32> -> vector<1x8x1xf32>
    %39 = vector.broadcast %38 : vector<1x8x1xf32> to vector<1x8x8xf32>
    %40 = arith.mulf %35, %39 : vector<1x8x8xf32>
    %41 = arith.truncf %40 : vector<1x8x8xf32> to vector<1x8x8xbf16>
    "tpu.trace_start"() <{level = 10 : i32, message = "bqk,bkd->bqd"}> : () -> ()
    %cst_16 = arith.constant dense<0.000000e+00> : vector<1x8x8xf32>
    %42 = tpu.matmul %41, %27, %cst_16 {dimension_numbers = #tpu.dot_dimension_numbers<[2], [1], [1], [2], [0, 0, 0, 1, 1, 2], [0], [0]>} : vector<1x8x8xbf16>, vector<1x8x8xbf16>, vector<1x8x8xf32> -> vector<1x8x8xf32>
    "tpu.trace_stop"() : () -> ()
    %43 = vector.shape_cast %42 : vector<1x8x8xf32> to vector<8x8xf32>
    %44 = arith.truncf %43 : vector<8x8xf32> to vector<8x8xbf16>
    %c0_17 = arith.constant 0 : index
    %c0_18 = arith.constant 0 : index
    %45 = vector.load %arg17[%c0_17, %c0_18] : memref<8x32xbf16, #tpu.memory_space<vmem>>, vector<8x8xbf16>
    tpu.vector_store %arg17[%c0_17, %c0_18], %44 {strides = array<i32>} : memref<8x32xbf16, #tpu.memory_space<vmem>>, vector<8x8xbf16>,
    %46 = vector.extract_strided_slice %17 {offsets = [0, 0, 8], sizes = [1, 8, 8], strides = [1, 1, 1]} : vector<1x8x32xbf16> to vector<1x8x8xbf16>
    %47 = vector.extract_strided_slice %20 {offsets = [0, 0, 8], sizes = [1, 8, 8], strides = [1, 1, 1]} : vector<1x8x32xbf16> to vector<1x8x8xbf16>
    %48 = vector.extract_strided_slice %23 {offsets = [0, 0, 8], sizes = [1, 8, 8], strides = [1, 1, 1]} : vector<1x8x32xbf16> to vector<1x8x8xbf16>
    "tpu.trace_start"() <{level = 10 : i32, message = "bqd,bkd->bqk"}> : () -> ()
    %cst_19 = arith.constant dense<0.000000e+00> : vector<1x8x8xf32>
    %49 = tpu.matmul %46, %47, %cst_19 {dimension_numbers = #tpu.dot_dimension_numbers<[2], [2], [1], [1], [0, 0, 0, 1, 1, 1], [0], [0]>} : vector<1x8x8xbf16>, vector<1x8x8xbf16>, vector<1x8x8xf32> -> vector<1x8x8xf32>
    "tpu.trace_stop"() : () -> ()
    %50 = vector.broadcast %24 : vector<1x1x8xf32> to vector<1x8x8xf32>
    %51 = arith.addf %49, %50 : vector<1x8x8xf32>
    %cst_20 = arith.constant dense<0xFF800000> : vector<1x8xf32>
    %52 = vector.multi_reduction <maximumf>, %51, %cst_20 [2] : vector<1x8x8xf32> to vector<1x8xf32>
    %53 = vector.shape_cast %52 : vector<1x8xf32> to vector<1x8x1xf32>
    %54 = vector.broadcast %53 : vector<1x8x1xf32> to vector<1x8x8xf32>
    %55 = arith.subf %51, %54 : vector<1x8x8xf32>
    %56 = math.exp %55 : vector<1x8x8xf32>
    %cst_21 = arith.constant dense<0.000000e+00> : vector<1x8xf32>
    %57 = vector.multi_reduction <add>, %56, %cst_21 [2] : vector<1x8x8xf32> to vector<1x8xf32>
    %58 = vector.shape_cast %57 : vector<1x8xf32> to vector<1x8x1xf32>
    %59 = tpu.reciprocal %58 {approx = true} : vector<1x8x1xf32> -> vector<1x8x1xf32>
    %60 = vector.broadcast %59 : vector<1x8x1xf32> to vector<1x8x8xf32>
    %61 = arith.mulf %56, %60 : vector<1x8x8xf32>
    %62 = arith.truncf %61 : vector<1x8x8xf32> to vector<1x8x8xbf16>
    "tpu.trace_start"() <{level = 10 : i32, message = "bqk,bkd->bqd"}> : () -> ()
    %cst_22 = arith.constant dense<0.000000e+00> : vector<1x8x8xf32>
    %63 = tpu.matmul %62, %48, %cst_22 {dimension_numbers = #tpu.dot_dimension_numbers<[2], [1], [1], [2], [0, 0, 0, 1, 1, 2], [0], [0]>} : vector<1x8x8xbf16>, vector<1x8x8xbf16>, vector<1x8x8xf32> -> vector<1x8x8xf32>
    "tpu.trace_stop"() : () -> ()
    %64 = vector.shape_cast %63 : vector<1x8x8xf32> to vector<8x8xf32>
    %65 = arith.truncf %64 : vector<8x8xf32> to vector<8x8xbf16>
    %c0_23 = arith.constant 0 : index
    %c8 = arith.constant 8 : index
    %66 = vector.load %arg17[%c0_23, %c8] : memref<8x32xbf16, #tpu.memory_space<vmem>>, vector<8x8xbf16>
    tpu.vector_store %arg17[%c0_23, %c8], %65 {strides = array<i32>} : memref<8x32xbf16, #tpu.memory_space<vmem>>, vector<8x8xbf16>,
    %67 = vector.extract_strided_slice %17 {offsets = [0, 0, 16], sizes = [1, 8, 8], strides = [1, 1, 1]} : vector<1x8x32xbf16> to vector<1x8x8xbf16>
    %68 = vector.extract_strided_slice %20 {offsets = [0, 0, 16], sizes = [1, 8, 8], strides = [1, 1, 1]} : vector<1x8x32xbf16> to vector<1x8x8xbf16>
    %69 = vector.extract_strided_slice %23 {offsets = [0, 0, 16], sizes = [1, 8, 8], strides = [1, 1, 1]} : vector<1x8x32xbf16> to vector<1x8x8xbf16>
    "tpu.trace_start"() <{level = 10 : i32, message = "bqd,bkd->bqk"}> : () -> ()
    %cst_24 = arith.constant dense<0.000000e+00> : vector<1x8x8xf32>
    %70 = tpu.matmul %67, %68, %cst_24 {dimension_numbers = #tpu.dot_dimension_numbers<[2], [2], [1], [1], [0, 0, 0, 1, 1, 1], [0], [0]>} : vector<1x8x8xbf16>, vector<1x8x8xbf16>, vector<1x8x8xf32> -> vector<1x8x8xf32>
    "tpu.trace_stop"() : () -> ()
    %71 = vector.broadcast %24 : vector<1x1x8xf32> to vector<1x8x8xf32>
    %72 = arith.addf %70, %71 : vector<1x8x8xf32>
    %cst_25 = arith.constant dense<0xFF800000> : vector<1x8xf32>
    %73 = vector.multi_reduction <maximumf>, %72, %cst_25 [2] : vector<1x8x8xf32> to vector<1x8xf32>
    %74 = vector.shape_cast %73 : vector<1x8xf32> to vector<1x8x1xf32>
    %75 = vector.broadcast %74 : vector<1x8x1xf32> to vector<1x8x8xf32>
    %76 = arith.subf %72, %75 : vector<1x8x8xf32>
    %77 = math.exp %76 : vector<1x8x8xf32>
    %cst_26 = arith.constant dense<0.000000e+00> : vector<1x8xf32>
    %78 = vector.multi_reduction <add>, %77, %cst_26 [2] : vector<1x8x8xf32> to vector<1x8xf32>
    %79 = vector.shape_cast %78 : vector<1x8xf32> to vector<1x8x1xf32>
    %80 = tpu.reciprocal %79 {approx = true} : vector<1x8x1xf32> -> vector<1x8x1xf32>
    %81 = vector.broadcast %80 : vector<1x8x1xf32> to vector<1x8x8xf32>
    %82 = arith.mulf %77, %81 : vector<1x8x8xf32>
    %83 = arith.truncf %82 : vector<1x8x8xf32> to vector<1x8x8xbf16>
    "tpu.trace_start"() <{level = 10 : i32, message = "bqk,bkd->bqd"}> : () -> ()
    %cst_27 = arith.constant dense<0.000000e+00> : vector<1x8x8xf32>
    %84 = tpu.matmul %83, %69, %cst_27 {dimension_numbers = #tpu.dot_dimension_numbers<[2], [1], [1], [2], [0, 0, 0, 1, 1, 2], [0], [0]>} : vector<1x8x8xbf16>, vector<1x8x8xbf16>, vector<1x8x8xf32> -> vector<1x8x8xf32>
    "tpu.trace_stop"() : () -> ()
    %85 = vector.shape_cast %84 : vector<1x8x8xf32> to vector<8x8xf32>
    %86 = arith.truncf %85 : vector<8x8xf32> to vector<8x8xbf16>
    %c0_28 = arith.constant 0 : index
    %c16 = arith.constant 16 : index
    %87 = vector.load %arg17[%c0_28, %c16] : memref<8x32xbf16, #tpu.memory_space<vmem>>, vector<8x8xbf16>
    tpu.vector_store %arg17[%c0_28, %c16], %86 {strides = array<i32>} : memref<8x32xbf16, #tpu.memory_space<vmem>>, vector<8x8xbf16>,
    %88 = vector.extract_strided_slice %17 {offsets = [0, 0, 24], sizes = [1, 8, 8], strides = [1, 1, 1]} : vector<1x8x32xbf16> to vector<1x8x8xbf16>
    %89 = vector.extract_strided_slice %20 {offsets = [0, 0, 24], sizes = [1, 8, 8], strides = [1, 1, 1]} : vector<1x8x32xbf16> to vector<1x8x8xbf16>
    %90 = vector.extract_strided_slice %23 {offsets = [0, 0, 24], sizes = [1, 8, 8], strides = [1, 1, 1]} : vector<1x8x32xbf16> to vector<1x8x8xbf16>
    "tpu.trace_start"() <{level = 10 : i32, message = "bqd,bkd->bqk"}> : () -> ()
    %cst_29 = arith.constant dense<0.000000e+00> : vector<1x8x8xf32>
    %91 = tpu.matmul %88, %89, %cst_29 {dimension_numbers = #tpu.dot_dimension_numbers<[2], [2], [1], [1], [0, 0, 0, 1, 1, 1], [0], [0]>} : vector<1x8x8xbf16>, vector<1x8x8xbf16>, vector<1x8x8xf32> -> vector<1x8x8xf32>
    "tpu.trace_stop"() : () -> ()
    %92 = vector.broadcast %24 : vector<1x1x8xf32> to vector<1x8x8xf32>
    %93 = arith.addf %91, %92 : vector<1x8x8xf32>
    %cst_30 = arith.constant dense<0xFF800000> : vector<1x8xf32>
    %94 = vector.multi_reduction <maximumf>, %93, %cst_30 [2] : vector<1x8x8xf32> to vector<1x8xf32>
    %95 = vector.shape_cast %94 : vector<1x8xf32> to vector<1x8x1xf32>
    %96 = vector.broadcast %95 : vector<1x8x1xf32> to vector<1x8x8xf32>
    %97 = arith.subf %93, %96 : vector<1x8x8xf32>
    %98 = math.exp %97 : vector<1x8x8xf32>
    %cst_31 = arith.constant dense<0.000000e+00> : vector<1x8xf32>
    %99 = vector.multi_reduction <add>, %98, %cst_31 [2] : vector<1x8x8xf32> to vector<1x8xf32>
    %100 = vector.shape_cast %99 : vector<1x8xf32> to vector<1x8x1xf32>
    %101 = tpu.reciprocal %100 {approx = true} : vector<1x8x1xf32> -> vector<1x8x1xf32>
    %102 = vector.broadcast %101 : vector<1x8x1xf32> to vector<1x8x8xf32>
    %103 = arith.mulf %98, %102 : vector<1x8x8xf32>
    %104 = arith.truncf %103 : vector<1x8x8xf32> to vector<1x8x8xbf16>
    "tpu.trace_start"() <{level = 10 : i32, message = "bqk,bkd->bqd"}> : () -> ()
    %cst_32 = arith.constant dense<0.000000e+00> : vector<1x8x8xf32>
    %105 = tpu.matmul %104, %90, %cst_32 {dimension_numbers = #tpu.dot_dimension_numbers<[2], [1], [1], [2], [0, 0, 0, 1, 1, 2], [0], [0]>} : vector<1x8x8xbf16>, vector<1x8x8xbf16>, vector<1x8x8xf32> -> vector<1x8x8xf32>
    "tpu.trace_stop"() : () -> ()
    %106 = vector.shape_cast %105 : vector<1x8x8xf32> to vector<8x8xf32>
    %107 = arith.truncf %106 : vector<8x8xf32> to vector<8x8xbf16>
    %c0_33 = arith.constant 0 : index
    %c24 = arith.constant 24 : index
    %108 = vector.load %arg17[%c0_33, %c24] : memref<8x32xbf16, #tpu.memory_space<vmem>>, vector<8x8xbf16>
    tpu.vector_store %arg17[%c0_33, %c24], %107 {strides = array<i32>} : memref<8x32xbf16, #tpu.memory_space<vmem>>, vector<8x8xbf16>,
    %c0_34 = arith.constant 0 : index
    %c0_35 = arith.constant 0 : index
    %109 = vector.load %arg17[%c0_34, %c0_35] : memref<8x32xbf16, #tpu.memory_space<vmem>>, vector<8x32xbf16>
    %c0_36 = arith.constant 0 : index
    %c0_37 = arith.constant 0 : index
    %c0_38 = arith.constant 0 : index
    %110 = vector.load %arg6[%c0_36, %c0_37, %c0_38] : memref<1x32x32xbf16, #tpu.memory_space<vmem>>, vector<1x32x32xbf16>
    %111 = vector.shape_cast %110 : vector<1x32x32xbf16> to vector<32x32xbf16>
    %cst_39 = arith.constant dense<0.000000e+00> : vector<8x32xf32>
    %112 = tpu.matmul %109, %111, %cst_39 {dimension_numbers = #tpu.dot_dimension_numbers<[1], [0], [0], [1], [0, 0, 1, 1], [], []>} : vector<8x32xbf16>, vector<32x32xbf16>, vector<8x32xf32> -> vector<8x32xf32>
    %c0_40 = arith.constant 0 : index
    %c0_41 = arith.constant 0 : index
    %c0_42 = arith.constant 0 : index
    %113 = vector.load %arg7[%c0_40, %c0_41, %c0_42] : memref<1x1x32xf32, #tpu.memory_space<vmem>>, vector<1x1x32xf32>
    %114 = vector.shape_cast %113 : vector<1x1x32xf32> to vector<1x32xf32>
    %115 = vector.broadcast %114 : vector<1x32xf32> to vector<8x32xf32>
    %116 = arith.addf %112, %115 : vector<8x32xf32>
    %117 = arith.addf %4, %116 : vector<8x32xf32>
    %c0_43 = arith.constant 0 : index
    %c0_44 = arith.constant 0 : index
    %c0_45 = arith.constant 0 : index
    %118 = vector.load %arg12[%c0_43, %c0_44, %c0_45] : memref<1x1x32xf32, #tpu.memory_space<vmem>>, vector<1x1x32xf32>
    %119 = vector.shape_cast %118 : vector<1x1x32xf32> to vector<1x32xf32>
    %c0_46 = arith.constant 0 : index
    %c0_47 = arith.constant 0 : index
    %c0_48 = arith.constant 0 : index
    %120 = vector.load %arg13[%c0_46, %c0_47, %c0_48] : memref<1x1x32xf32, #tpu.memory_space<vmem>>, vector<1x1x32xf32>
    %121 = vector.shape_cast %120 : vector<1x1x32xf32> to vector<1x32xf32>
    %cst_49 = arith.constant dense<0.000000e+00> : vector<8xf32>
    %122 = vector.multi_reduction <add>, %117, %cst_49 [1] : vector<8x32xf32> to vector<8xf32>
    %123 = vector.shape_cast %122 : vector<8xf32> to vector<8x1xf32>
    %cst_50 = arith.constant 3.200000e+01 : f32
    %124 = vector.broadcast %cst_50 : f32 to vector<8x1xf32>
    %125 = arith.divf %123, %124 : vector<8x1xf32>
    %126 = vector.broadcast %125 : vector<8x1xf32> to vector<8x32xf32>
    %127 = arith.subf %117, %126 : vector<8x32xf32>
    %128 = arith.mulf %127, %127 : vector<8x32xf32>
    %cst_51 = arith.constant dense<0.000000e+00> : vector<8xf32>
    %129 = vector.multi_reduction <add>, %128, %cst_51 [1] : vector<8x32xf32> to vector<8xf32>
    %130 = vector.shape_cast %129 : vector<8xf32> to vector<8x1xf32>
    %cst_52 = arith.constant 3.200000e+01 : f32
    %131 = vector.broadcast %cst_52 : f32 to vector<8x1xf32>
    %132 = arith.divf %130, %131 : vector<8x1xf32>
    %133 = vector.broadcast %125 : vector<8x1xf32> to vector<8x32xf32>
    %134 = arith.subf %117, %133 : vector<8x32xf32>
    %cst_53 = arith.constant 9.99999974E-6 : f32
    %135 = vector.broadcast %cst_53 : f32 to vector<8x1xf32>
    %136 = arith.addf %132, %135 : vector<8x1xf32>
    %137 = math.rsqrt %136 : vector<8x1xf32>
    %138 = vector.broadcast %137 : vector<8x1xf32> to vector<8x32xf32>
    %139 = arith.mulf %134, %138 : vector<8x32xf32>
    %140 = vector.broadcast %119 : vector<1x32xf32> to vector<8x32xf32>
    %141 = arith.mulf %139, %140 : vector<8x32xf32>
    %142 = vector.broadcast %121 : vector<1x32xf32> to vector<8x32xf32>
    %143 = arith.addf %141, %142 : vector<8x32xf32>
    %144 = arith.truncf %143 : vector<8x32xf32> to vector<8x32xbf16>
    %c0_54 = arith.constant 0 : index
    %c0_55 = arith.constant 0 : index
    %c0_56 = arith.constant 0 : index
    %145 = vector.load %arg8[%c0_54, %c0_55, %c0_56] : memref<1x32x64xbf16, #tpu.memory_space<vmem>>, vector<1x32x64xbf16>
    %146 = vector.shape_cast %145 : vector<1x32x64xbf16> to vector<32x64xbf16>
    %cst_57 = arith.constant dense<0.000000e+00> : vector<8x64xf32>
    %147 = tpu.matmul %144, %146, %cst_57 {dimension_numbers = #tpu.dot_dimension_numbers<[1], [0], [0], [1], [0, 0, 1, 1], [], []>} : vector<8x32xbf16>, vector<32x64xbf16>, vector<8x64xf32> -> vector<8x64xf32>
    %c0_58 = arith.constant 0 : index
    %c0_59 = arith.constant 0 : index
    %c0_60 = arith.constant 0 : index
    %148 = vector.load %arg9[%c0_58, %c0_59, %c0_60] : memref<1x1x64xf32, #tpu.memory_space<vmem>>, vector<1x1x64xf32>
    %149 = vector.shape_cast %148 : vector<1x1x64xf32> to vector<1x64xf32>
    %150 = vector.broadcast %149 : vector<1x64xf32> to vector<8x64xf32>
    %151 = arith.addf %147, %150 : vector<8x64xf32>
    %cst_61 = arith.constant 0.000000e+00 : f32
    %152 = vector.broadcast %cst_61 : f32 to vector<8x64xf32>
    %153 = arith.maximumf %151, %152 : vector<8x64xf32>
    %154 = arith.truncf %153 : vector<8x64xf32> to vector<8x64xbf16>
    %c0_62 = arith.constant 0 : index
    %c0_63 = arith.constant 0 : index
    %c0_64 = arith.constant 0 : index
    %155 = vector.load %arg10[%c0_62, %c0_63, %c0_64] : memref<1x64x32xbf16, #tpu.memory_space<vmem>>, vector<1x64x32xbf16>
    %156 = vector.shape_cast %155 : vector<1x64x32xbf16> to vector<64x32xbf16>
    %cst_65 = arith.constant dense<0.000000e+00> : vector<8x32xf32>
    %157 = tpu.matmul %154, %156, %cst_65 {dimension_numbers = #tpu.dot_dimension_numbers<[1], [0], [0], [1], [0, 0, 1, 1], [], []>} : vector<8x64xbf16>, vector<64x32xbf16>, vector<8x32xf32> -> vector<8x32xf32>
    %c0_66 = arith.constant 0 : index
    %c0_67 = arith.constant 0 : index
    %c0_68 = arith.constant 0 : index
    %158 = vector.load %arg11[%c0_66, %c0_67, %c0_68] : memref<1x1x32xf32, #tpu.memory_space<vmem>>, vector<1x1x32xf32>
    %159 = vector.shape_cast %158 : vector<1x1x32xf32> to vector<1x32xf32>
    %160 = vector.broadcast %159 : vector<1x32xf32> to vector<8x32xf32>
    %161 = arith.addf %157, %160 : vector<8x32xf32>
    %162 = arith.addf %143, %161 : vector<8x32xf32>
    %c0_69 = arith.constant 0 : index
    %c0_70 = arith.constant 0 : index
    %c0_71 = arith.constant 0 : index
    %163 = vector.load %arg14[%c0_69, %c0_70, %c0_71] : memref<1x1x32xf32, #tpu.memory_space<vmem>>, vector<1x1x32xf32>
    %164 = vector.shape_cast %163 : vector<1x1x32xf32> to vector<1x32xf32>
    %c0_72 = arith.constant 0 : index
    %c0_73 = arith.constant 0 : index
    %c0_74 = arith.constant 0 : index
    %165 = vector.load %arg15[%c0_72, %c0_73, %c0_74] : memref<1x1x32xf32, #tpu.memory_space<vmem>>, vector<1x1x32xf32>
    %166 = vector.shape_cast %165 : vector<1x1x32xf32> to vector<1x32xf32>
    %cst_75 = arith.constant dense<0.000000e+00> : vector<8xf32>
    %167 = vector.multi_reduction <add>, %162, %cst_75 [1] : vector<8x32xf32> to vector<8xf32>
    %168 = vector.shape_cast %167 : vector<8xf32> to vector<8x1xf32>
    %cst_76 = arith.constant 3.200000e+01 : f32
    %169 = vector.broadcast %cst_76 : f32 to vector<8x1xf32>
    %170 = arith.divf %168, %169 : vector<8x1xf32>
    %171 = vector.broadcast %170 : vector<8x1xf32> to vector<8x32xf32>
    %172 = arith.subf %162, %171 : vector<8x32xf32>
    %173 = arith.mulf %172, %172 : vector<8x32xf32>
    %cst_77 = arith.constant dense<0.000000e+00> : vector<8xf32>
    %174 = vector.multi_reduction <add>, %173, %cst_77 [1] : vector<8x32xf32> to vector<8xf32>
    %175 = vector.shape_cast %174 : vector<8xf32> to vector<8x1xf32>
    %cst_78 = arith.constant 3.200000e+01 : f32
    %176 = vector.broadcast %cst_78 : f32 to vector<8x1xf32>
    %177 = arith.divf %175, %176 : vector<8x1xf32>
    %178 = vector.broadcast %170 : vector<8x1xf32> to vector<8x32xf32>
    %179 = arith.subf %162, %178 : vector<8x32xf32>
    %cst_79 = arith.constant 9.99999974E-6 : f32
    %180 = vector.broadcast %cst_79 : f32 to vector<8x1xf32>
    %181 = arith.addf %177, %180 : vector<8x1xf32>
    %182 = math.rsqrt %181 : vector<8x1xf32>
    %183 = vector.broadcast %182 : vector<8x1xf32> to vector<8x32xf32>
    %184 = arith.mulf %179, %183 : vector<8x32xf32>
    %185 = vector.broadcast %164 : vector<1x32xf32> to vector<8x32xf32>
    %186 = arith.mulf %184, %185 : vector<8x32xf32>
    %187 = vector.broadcast %166 : vector<1x32xf32> to vector<8x32xf32>
    %188 = arith.addf %186, %187 : vector<8x32xf32>
    %189 = vector.shape_cast %188 : vector<8x32xf32> to vector<1x8x32xf32>
    %c0_80 = arith.constant 0 : index
    %c0_81 = arith.constant 0 : index
    %c0_82 = arith.constant 0 : index
    %190 = vector.load %arg16[%c0_80, %c0_81, %c0_82] : memref<1x8x32xf32, #tpu.memory_space<vmem>>, vector<1x8x32xf32>
    tpu.vector_store %arg16[%c0_80, %c0_81, %c0_82], %189 {strides = array<i32>} : memref<1x8x32xf32, #tpu.memory_space<vmem>>, vector<1x8x32xf32>,
    return
  }
  func.func @transform_0(%arg0: i32, %arg1: i32) -> (i32, i32, i32) {
    %c0_i32 = arith.constant 0 : i32
    %c0_i32_0 = arith.constant 0 : i32
    %c0_i32_1 = arith.constant 0 : i32
    return %arg0, %c0_i32, %c0_i32_0 : i32, i32, i32
  }
  func.func @transform_1(%arg0: i32, %arg1: i32) -> (i32, i32, i32) {
    %c0_i32 = arith.constant 0 : i32
    %c0_i32_0 = arith.constant 0 : i32
    %c0_i32_1 = arith.constant 0 : i32
    return %arg0, %c0_i32, %c0_i32_0 : i32, i32, i32
  }
  func.func @transform_2(%arg0: i32, %arg1: i32) -> (i32, i32, i32) {
    %c0_i32 = arith.constant 0 : i32
    %c0_i32_0 = arith.constant 0 : i32
    %c0_i32_1 = arith.constant 0 : i32
    return %arg1, %c0_i32, %c0_i32_0 : i32, i32, i32
  }
  func.func @transform_3(%arg0: i32, %arg1: i32) -> (i32, i32, i32) {
    %c0_i32 = arith.constant 0 : i32
    %c0_i32_0 = arith.constant 0 : i32
    %c0_i32_1 = arith.constant 0 : i32
    return %arg1, %c0_i32, %c0_i32_0 : i32, i32, i32
  }
  func.func @transform_4(%arg0: i32, %arg1: i32) -> (i32, i32, i32) {
    %c0_i32 = arith.constant 0 : i32
    %c0_i32_0 = arith.constant 0 : i32
    %c0_i32_1 = arith.constant 0 : i32
    return %arg1, %c0_i32, %c0_i32_0 : i32, i32, i32
  }
  func.func @transform_5(%arg0: i32, %arg1: i32) -> (i32, i32, i32) {
    %c0_i32 = arith.constant 0 : i32
    %c0_i32_0 = arith.constant 0 : i32
    %c0_i32_1 = arith.constant 0 : i32
    return %arg1, %c0_i32, %c0_i32_0 : i32, i32, i32
  }
  func.func @transform_6(%arg0: i32, %arg1: i32) -> (i32, i32, i32) {
    %c0_i32 = arith.constant 0 : i32
    %c0_i32_0 = arith.constant 0 : i32
    %c0_i32_1 = arith.constant 0 : i32
    return %arg1, %c0_i32, %c0_i32_0 : i32, i32, i32
  }
  func.func @transform_7(%arg0: i32, %arg1: i32) -> (i32, i32, i32) {
    %c0_i32 = arith.constant 0 : i32
    %c0_i32_0 = arith.constant 0 : i32
    %c0_i32_1 = arith.constant 0 : i32
    return %arg1, %c0_i32, %c0_i32_0 : i32, i32, i32
  }
  func.func @transform_8(%arg0: i32, %arg1: i32) -> (i32, i32, i32) {
    %c0_i32 = arith.constant 0 : i32
    %c0_i32_0 = arith.constant 0 : i32
    %c0_i32_1 = arith.constant 0 : i32
    return %arg1, %c0_i32, %c0_i32_0 : i32, i32, i32
  }
  func.func @transform_9(%arg0: i32, %arg1: i32) -> (i32, i32, i32) {
    %c0_i32 = arith.constant 0 : i32
    %c0_i32_0 = arith.constant 0 : i32
    %c0_i32_1 = arith.constant 0 : i32
    return %arg1, %c0_i32, %c0_i32_0 : i32, i32, i32
  }
  func.func @transform_10(%arg0: i32, %arg1: i32) -> (i32, i32, i32) {
    %c0_i32 = arith.constant 0 : i32
    %c0_i32_0 = arith.constant 0 : i32
    %c0_i32_1 = arith.constant 0 : i32
    return %arg1, %c0_i32, %c0_i32_0 : i32, i32, i32
  }
  func.func @transform_11(%arg0: i32, %arg1: i32) -> (i32, i32, i32) {
    %c0_i32 = arith.constant 0 : i32
    %c0_i32_0 = arith.constant 0 : i32
    %c0_i32_1 = arith.constant 0 : i32
    return %arg1, %c0_i32, %c0_i32_0 : i32, i32, i32
  }
  func.func @transform_12(%arg0: i32, %arg1: i32) -> (i32, i32, i32) {
    %c0_i32 = arith.constant 0 : i32
    %c0_i32_0 = arith.constant 0 : i32
    %c0_i32_1 = arith.constant 0 : i32
    return %arg1, %c0_i32, %c0_i32_0 : i32, i32, i32
  }
  func.func @transform_13(%arg0: i32, %arg1: i32) -> (i32, i32, i32) {
    %c0_i32 = arith.constant 0 : i32
    %c0_i32_0 = arith.constant 0 : i32
    %c0_i32_1 = arith.constant 0 : i32
    return %arg1, %c0_i32, %c0_i32_0 : i32, i32, i32
  }
  func.func @transform_14(%arg0: i32, %arg1: i32) -> (i32, i32, i32) {
    %c0_i32 = arith.constant 0 : i32
    %c0_i32_0 = arith.constant 0 : i32
    %c0_i32_1 = arith.constant 0 : i32
    return %arg0, %c0_i32, %c0_i32_0 : i32, i32, i32
  }
}

</mosaic_0001>

<llo_original>
// kernel: tpu_custom_call.1
$region0: #{tpu_custom_call.1}
  #allocation0 [shape = 'u32[]', space=smem, size = 0x4, offset = 0x4, fixed_abs, tag = 'smem constant byte address 0x4 - core index']
  #allocation1 [shape = 'u32[144,128]{1,0:T(1,128)}', space=vmem, size = 0x12000, scoped, tag = 'internal scratch']
  #allocation2 [shape = 'bf16[8,32]{1,0:T(8,128)(2,1)}', space=vmem, size = 0x800, scoped, tag = 'scratch operand']
  %s0 = inlined_call_operand.hbm [shape: f32[2,8,32], index: 0, kind: input, shape index: {}]
  %s1 = inlined_call_operand.vmem [shape: f32[2,1,8], index: 1, kind: input, shape index: {}]
  %s2 = inlined_call_operand.vmem [shape: bf16[2,32,96], index: 2, kind: input, shape index: {}]
  %s3 = inlined_call_operand.vmem [shape: f32[2,1,96], index: 3, kind: input, shape index: {}]
  %s4 = inlined_call_operand.vmem [shape: bf16[2,32,32], index: 4, kind: input, shape index: {}]
  %s5 = inlined_call_operand.vmem [shape: f32[2,1,32], index: 5, kind: input, shape index: {}]
  %s6 = inlined_call_operand.vmem [shape: bf16[2,32,64], index: 6, kind: input, shape index: {}]
  %s7 = inlined_call_operand.vmem [shape: f32[2,1,64], index: 7, kind: input, shape index: {}]
  %s8 = inlined_call_operand.vmem [shape: bf16[2,64,32], index: 8, kind: input, shape index: {}]
  %s9 = inlined_call_operand.vmem [shape: f32[2,1,32], index: 9, kind: input, shape index: {}]
  %s10 = inlined_call_operand.vmem [shape: f32[2,1,32], index: 10, kind: input, shape index: {}]
  %s11 = inlined_call_operand.vmem [shape: f32[2,1,32], index: 11, kind: input, shape index: {}]
  %s12 = inlined_call_operand.vmem [shape: f32[2,1,32], index: 12, kind: input, shape index: {}]
  %s13 = inlined_call_operand.vmem [shape: f32[2,1,32], index: 13, kind: input, shape index: {}]
  %s14 = inlined_call_operand.hbm [shape: f32[2,8,32], index: 14, kind: output, shape index: {}]
  %s15 = sld [smem:[#allocation0]]
  $region97: #{tpu_custom_call.1} parent=0
    _
  %s17 = ssub.s32 1, %s15
  %s18 = scalar_select 0, %s17, %s15
  $region1: #{tpu_custom_call.1} parent=0
    #allocation3 [shape = 'u8[8192]{0}', space=vmem, size = 0x2000, scoped, tag = 'input window, operand 0']
    #allocation4 [shape = 's32[2]{0}', space=sflag, size = 0x8, scoped, tag = 'scoped memory for tpu_custom_call.1']
    #allocation5 [shape = 's32[2]{0}', space=sflag, size = 0x8, scoped, tag = 'scoped memory for tpu_custom_call.1']
    #allocation6 [shape = 'u8[8192]{0}', space=vmem, size = 0x2000, scoped, tag = 'output window, operand 0']
    %19 = vsyncpa [#allocation4], 0
    %s20 = scalar_lea.sflag [#allocation4], 1
    %21 = vsyncpa %s20, 0
    %22 = vsyncpa [#allocation5], 0
    %s23 = scalar_lea.sflag [#allocation5], 1
    %24 = vsyncpa %s23, 0
    loop: start=0, step=1, limit=6
    $region2: #{tpu_custom_call.1} parent=1 // loop_pre_header
      _
    $region3: #{tpu_custom_call.1} parent=1 // loop_header
      %s26 = sphi 0, %s30
      %p27 = scmp.ge.s32.totalorder %s26, 6
      %s33 = sphi 0, %s45
      %s34 = sphi 0, %s41
      %s35 = sphi 0, %s33
      %s36 = sphi 0, %s34
      %s37 = sphi 0, %s35
      %s38 = sphi 0, %s36
      %s48 = sphi 0, %s50
      %s51 = sphi 0, %s48
      %s52 = sphi 0, %s51
      %s68 = sphi 0, %s52
      %s74 = sphi 0, %s76
      %s77 = sphi 0, %s74
      %s78 = sphi 0, %s77
      %s94 = sphi 0, %s78
      %s100 = sphi 0, %s102
      %s103 = sphi 0, %s100
      %s104 = sphi 0, %s103
      %s120 = sphi 0, %s104
      %s126 = sphi 0, %s128
      %s129 = sphi 0, %s126
      %s130 = sphi 0, %s129
      %s146 = sphi 0, %s130
      %s152 = sphi 0, %s154
      %s155 = sphi 0, %s152
      %s156 = sphi 0, %s155
      %s172 = sphi 0, %s156
      %s178 = sphi 0, %s180
      %s181 = sphi 0, %s178
      %s182 = sphi 0, %s181
      %s198 = sphi 0, %s182
      %s204 = sphi 0, %s206
      %s207 = sphi 0, %s204
      %s208 = sphi 0, %s207
      %s224 = sphi 0, %s208
      %s230 = sphi 0, %s232
      %s233 = sphi 0, %s230
      %s234 = sphi 0, %s233
      %s250 = sphi 0, %s234
      %s256 = sphi 0, %s258
      %s259 = sphi 0, %s256
      %s260 = sphi 0, %s259
      %s276 = sphi 0, %s260
      %s282 = sphi 0, %s284
      %s285 = sphi 0, %s282
      %s286 = sphi 0, %s285
      %s302 = sphi 0, %s286
      %s308 = sphi 0, %s310
      %s311 = sphi 0, %s308
      %s312 = sphi 0, %s311
      %s328 = sphi 0, %s312
      %s334 = sphi 0, %s336
      %s337 = sphi 0, %s334
      %s338 = sphi 0, %s337
      %s354 = sphi 0, %s338
      %s360 = sphi 0, %s362
      %s363 = sphi 0, %s360
      %s364 = sphi 0, %s363
      %s380 = sphi 0, %s364
      %s386 = sphi 0, %s388
      %s389 = sphi 0, %s386
      %s390 = sphi 0, %s389
      %s406 = sphi 0, %s390
      %s412 = sphi 0, %s414
      %s415 = sphi 0, %s412
      %s416 = sphi 0, %s415
      %s432 = sphi 0, %s416
    $region4: #{tpu_custom_call.1} parent=1 // loop_header_branch
      %29 = sbr.rel (%p27) target = $region8
    $region5: #{tpu_custom_call.1} parent=1 // loop_body
      %s31 = ssub.s32 %s26, 1
      %s32 = ssub.s32 %s26, 2
      %s39 = sadd.s32 1, %s34
      %p40 = scmp.ge.s32.totalorder %s39, 2
      %s41 = scalar_select %p40, 0, %s39
      %s42 = sadd.s32 1, %s33
      %s43 = scalar_select %p40, %s42, %s33
      %p44 = scmp.ge.s32.totalorder %s43, 2
      %s45 = scalar_select %p44, 0, %s43
      %s46 = ssub.s32 %s33, %s45
      %p47 = scmp.eq.s32.totalorder %s46, 0
      %s49 = sadd.s32 %s48, 1
      %s50 = scalar_select %p47, %s48, %s49
      %p53 = pneg %p47
      %p54 = scmp.eq.s32.totalorder %s26, 3
      %p55 = por %p53, %p54
      %p56 = scmp.ne.s32.totalorder %s48, %s51
      %p57 = scmp.eq.s32.totalorder %s26, 0
      %p58 = por %p56, %p57
      %p59 = scmp.ne.s32.totalorder %s48, %s51
      %p60 = scmp.eq.s32.totalorder %s31, 3
      %p61 = por %p59, %p60
      %p62 = scmp.ne.s32.totalorder %s51, %s52
      %p63 = scmp.eq.s32.totalorder %s31, 0
      %p64 = por %p62, %p63
      %p65 = scmp.ne.s32.totalorder %s51, %s52
      %p66 = scmp.eq.s32.totalorder %s32, 3
      %p67 = por %p65, %p66
      %p69 = scmp.ne.s32.totalorder %s52, %s68
      %p70 = scmp.eq.s32.totalorder %s32, 0
      %p71 = por %p69, %p70
      %s72 = ssub.s32 %s33, %s45
      %p73 = scmp.eq.s32.totalorder %s72, 0
      %s75 = sadd.s32 %s74, 1
      %s76 = scalar_select %p73, %s74, %s75
      %p79 = pneg %p73
      %p80 = scmp.eq.s32.totalorder %s26, 3
      %p81 = por %p79, %p80
      %p82 = scmp.ne.s32.totalorder %s74, %s77
      %p83 = scmp.eq.s32.totalorder %s26, 0
      %p84 = por %p82, %p83
      %p85 = scmp.ne.s32.totalorder %s74, %s77
      %p86 = scmp.eq.s32.totalorder %s31, 3
      %p87 = por %p85, %p86
      %p88 = scmp.ne.s32.totalorder %s77, %s78
      %p89 = scmp.eq.s32.totalorder %s31, 0
      %p90 = por %p88, %p89
      %p91 = scmp.ne.s32.totalorder %s77, %s78
      %p92 = scmp.eq.s32.totalorder %s32, 3
      %p93 = por %p91, %p92
      %p95 = scmp.ne.s32.totalorder %s78, %s94
      %p96 = scmp.eq.s32.totalorder %s32, 0
      %p97 = por %p95, %p96
      %s98 = ssub.s32 %s34, %s41
      %p99 = scmp.eq.s32.totalorder %s98, 0
      %s101 = sadd.s32 %s100, 1
      %s102 = scalar_select %p99, %s100, %s101
      %p105 = pneg %p99
      %p106 = scmp.eq.s32.totalorder %s26, 3
      %p107 = por %p105, %p106
      %p108 = scmp.ne.s32.totalorder %s100, %s103
      %p109 = scmp.eq.s32.totalorder %s26, 0
      %p110 = por %p108, %p109
      %p111 = scmp.ne.s32.totalorder %s100, %s103
      %p112 = scmp.eq.s32.totalorder %s31, 3
      %p113 = por %p111, %p112
      %p114 = scmp.ne.s32.totalorder %s103, %s104
      %p115 = scmp.eq.s32.totalorder %s31, 0
      %p116 = por %p114, %p115
      %p117 = scmp.ne.s32.totalorder %s103, %s104
      %p118 = scmp.eq.s32.totalorder %s32, 3
      %p119 = por %p117, %p118
      %p121 = scmp.ne.s32.totalorder %s104, %s120
      %p122 = scmp.eq.s32.totalorder %s32, 0
      %p123 = por %p121, %p122
      %s124 = ssub.s32 %s34, %s41
      %p125 = scmp.eq.s32.totalorder %s124, 0
      %s127 = sadd.s32 %s126, 1
      %s128 = scalar_select %p125, %s126, %s127
      %p131 = pneg %p125
      %p132 = scmp.eq.s32.totalorder %s26, 3
      %p133 = por %p131, %p132
      %p134 = scmp.ne.s32.totalorder %s126, %s129
      %p135 = scmp.eq.s32.totalorder %s26, 0
      %p136 = por %p134, %p135
      %p137 = scmp.ne.s32.totalorder %s126, %s129
      %p138 = scmp.eq.s32.totalorder %s31, 3
      %p139 = por %p137, %p138
      %p140 = scmp.ne.s32.totalorder %s129, %s130
      %p141 = scmp.eq.s32.totalorder %s31, 0
      %p142 = por %p140, %p141
      %p143 = scmp.ne.s32.totalorder %s129, %s130
      %p144 = scmp.eq.s32.totalorder %s32, 3
      %p145 = por %p143, %p144
      %p147 = scmp.ne.s32.totalorder %s130, %s146
      %p148 = scmp.eq.s32.totalorder %s32, 0
      %p149 = por %p147, %p148
      %s150 = ssub.s32 %s34, %s41
      %p151 = scmp.eq.s32.totalorder %s150, 0
      %s153 = sadd.s32 %s152, 1
      %s154 = scalar_select %p151, %s152, %s153
      %p157 = pneg %p151
      %p158 = scmp.eq.s32.totalorder %s26, 3
      %p159 = por %p157, %p158
      %p160 = scmp.ne.s32.totalorder %s152, %s155
      %p161 = scmp.eq.s32.totalorder %s26, 0
      %p162 = por %p160, %p161
      %p163 = scmp.ne.s32.totalorder %s152, %s155
      %p164 = scmp.eq.s32.totalorder %s31, 3
      %p165 = por %p163, %p164
      %p166 = scmp.ne.s32.totalorder %s155, %s156
      %p167 = scmp.eq.s32.totalorder %s31, 0
      %p168 = por %p166, %p167
      %p169 = scmp.ne.s32.totalorder %s155, %s156
      %p170 = scmp.eq.s32.totalorder %s32, 3
      %p171 = por %p169, %p170
      %p173 = scmp.ne.s32.totalorder %s156, %s172
      %p174 = scmp.eq.s32.totalorder %s32, 0
      %p175 = por %p173, %p174
      %s176 = ssub.s32 %s34, %s41
      %p177 = scmp.eq.s32.totalorder %s176, 0
      %s179 = sadd.s32 %s178, 1
      %s180 = scalar_select %p177, %s178, %s179
      %p183 = pneg %p177
      %p184 = scmp.eq.s32.totalorder %s26, 3
      %p185 = por %p183, %p184
      %p186 = scmp.ne.s32.totalorder %s178, %s181
      %p187 = scmp.eq.s32.totalorder %s26, 0
      %p188 = por %p186, %p187
      %p189 = scmp.ne.s32.totalorder %s178, %s181
      %p190 = scmp.eq.s32.totalorder %s31, 3
      %p191 = por %p189, %p190
      %p192 = scmp.ne.s32.totalorder %s181, %s182
      %p193 = scmp.eq.s32.totalorder %s31, 0
      %p194 = por %p192, %p193
      %p195 = scmp.ne.s32.totalorder %s181, %s182
      %p196 = scmp.eq.s32.totalorder %s32, 3
      %p197 = por %p195, %p196
      %p199 = scmp.ne.s32.totalorder %s182, %s198
      %p200 = scmp.eq.s32.totalorder %s32, 0
      %p201 = por %p199, %p200
      %s202 = ssub.s32 %s34, %s41
      %p203 = scmp.eq.s32.totalorder %s202, 0
      %s205 = sadd.s32 %s204, 1
      %s206 = scalar_select %p203, %s204, %s205
      %p209 = pneg %p203
      %p210 = scmp.eq.s32.totalorder %s26, 3
      %p211 = por %p209, %p210
      %p212 = scmp.ne.s32.totalorder %s204, %s207
      %p213 = scmp.eq.s32.totalorder %s26, 0
      %p214 = por %p212, %p213
      %p215 = scmp.ne.s32.totalorder %s204, %s207
      %p216 = scmp.eq.s32.totalorder %s31, 3
      %p217 = por %p215, %p216
      %p218 = scmp.ne.s32.totalorder %s207, %s208
      %p219 = scmp.eq.s32.totalorder %s31, 0
      %p220 = por %p218, %p219
      %p221 = scmp.ne.s32.totalorder %s207, %s208
      %p222 = scmp.eq.s32.totalorder %s32, 3
      %p223 = por %p221, %p222
      %p225 = scmp.ne.s32.totalorder %s208, %s224
      %p226 = scmp.eq.s32.totalorder %s32, 0
      %p227 = por %p225, %p226
      %s228 = ssub.s32 %s34, %s41
      %p229 = scmp.eq.s32.totalorder %s228, 0
      %s231 = sadd.s32 %s230, 1
      %s232 = scalar_select %p229, %s230, %s231
      %p235 = pneg %p229
      %p236 = scmp.eq.s32.totalorder %s26, 3
      %p237 = por %p235, %p236
      %p238 = scmp.ne.s32.totalorder %s230, %s233
      %p239 = scmp.eq.s32.totalorder %s26, 0
      %p240 = por %p238, %p239
      %p241 = scmp.ne.s32.totalorder %s230, %s233
      %p242 = scmp.eq.s32.totalorder %s31, 3
      %p243 = por %p241, %p242
      %p244 = scmp.ne.s32.totalorder %s233, %s234
      %p245 = scmp.eq.s32.totalorder %s31, 0
      %p246 = por %p244, %p245
      %p247 = scmp.ne.s32.totalorder %s233, %s234
      %p248 = scmp.eq.s32.totalorder %s32, 3
      %p249 = por %p247, %p248
      %p251 = scmp.ne.s32.totalorder %s234, %s250
      %p252 = scmp.eq.s32.totalorder %s32, 0
      %p253 = por %p251, %p252
      %s254 = ssub.s32 %s34, %s41
      %p255 = scmp.eq.s32.totalorder %s254, 0
      %s257 = sadd.s32 %s256, 1
      %s258 = scalar_select %p255, %s256, %s257
      %p261 = pneg %p255
      %p262 = scmp.eq.s32.totalorder %s26, 3
      %p263 = por %p261, %p262
      %p264 = scmp.ne.s32.totalorder %s256, %s259
      %p265 = scmp.eq.s32.totalorder %s26, 0
      %p266 = por %p264, %p265
      %p267 = scmp.ne.s32.totalorder %s256, %s259
      %p268 = scmp.eq.s32.totalorder %s31, 3
      %p269 = por %p267, %p268
      %p270 = scmp.ne.s32.totalorder %s259, %s260
      %p271 = scmp.eq.s32.totalorder %s31, 0
      %p272 = por %p270, %p271
      %p273 = scmp.ne.s32.totalorder %s259, %s260
      %p274 = scmp.eq.s32.totalorder %s32, 3
      %p275 = por %p273, %p274
      %p277 = scmp.ne.s32.totalorder %s260, %s276
      %p278 = scmp.eq.s32.totalorder %s32, 0
      %p279 = por %p277, %p278
      %s280 = ssub.s32 %s34, %s41
      %p281 = scmp.eq.s32.totalorder %s280, 0
      %s283 = sadd.s32 %s282, 1
      %s284 = scalar_select %p281, %s282, %s283
      %p287 = pneg %p281
      %p288 = scmp.eq.s32.totalorder %s26, 3
      %p289 = por %p287, %p288
      %p290 = scmp.ne.s32.totalorder %s282, %s285
      %p291 = scmp.eq.s32.totalorder %s26, 0
      %p292 = por %p290, %p291
      %p293 = scmp.ne.s32.totalorder %s282, %s285
      %p294 = scmp.eq.s32.totalorder %s31, 3
      %p295 = por %p293, %p294
      %p296 = scmp.ne.s32.totalorder %s285, %s286
      %p297 = scmp.eq.s32.totalorder %s31, 0
      %p298 = por %p296, %p297
      %p299 = scmp.ne.s32.totalorder %s285, %s286
      %p300 = scmp.eq.s32.totalorder %s32, 3
      %p301 = por %p299, %p300
      %p303 = scmp.ne.s32.totalorder %s286, %s302
      %p304 = scmp.eq.s32.totalorder %s32, 0
      %p305 = por %p303, %p304
      %s306 = ssub.s32 %s34, %s41
      %p307 = scmp.eq.s32.totalorder %s306, 0
      %s309 = sadd.s32 %s308, 1
      %s310 = scalar_select %p307, %s308, %s309
      %p313 = pneg %p307
      %p314 = scmp.eq.s32.totalorder %s26, 3
      %p315 = por %p313, %p314
      %p316 = scmp.ne.s32.totalorder %s308, %s311
      %p317 = scmp.eq.s32.totalorder %s26, 0
      %p318 = por %p316, %p317
      %p319 = scmp.ne.s32.totalorder %s308, %s311
      %p320 = scmp.eq.s32.totalorder %s31, 3
      %p321 = por %p319, %p320
      %p322 = scmp.ne.s32.totalorder %s311, %s312
      %p323 = scmp.eq.s32.totalorder %s31, 0
      %p324 = por %p322, %p323
      %p325 = scmp.ne.s32.totalorder %s311, %s312
      %p326 = scmp.eq.s32.totalorder %s32, 3
      %p327 = por %p325, %p326
      %p329 = scmp.ne.s32.totalorder %s312, %s328
      %p330 = scmp.eq.s32.totalorder %s32, 0
      %p331 = por %p329, %p330
      %s332 = ssub.s32 %s34, %s41
      %p333 = scmp.eq.s32.totalorder %s332, 0
      %s335 = sadd.s32 %s334, 1
      %s336 = scalar_select %p333, %s334, %s335
      %p339 = pneg %p333
      %p340 = scmp.eq.s32.totalorder %s26, 3
      %p341 = por %p339, %p340
      %p342 = scmp.ne.s32.totalorder %s334, %s337
      %p343 = scmp.eq.s32.totalorder %s26, 0
      %p344 = por %p342, %p343
      %p345 = scmp.ne.s32.totalorder %s334, %s337
      %p346 = scmp.eq.s32.totalorder %s31, 3
      %p347 = por %p345, %p346
      %p348 = scmp.ne.s32.totalorder %s337, %s338
      %p349 = scmp.eq.s32.totalorder %s31, 0
      %p350 = por %p348, %p349
      %p351 = scmp.ne.s32.totalorder %s337, %s338
      %p352 = scmp.eq.s32.totalorder %s32, 3
      %p353 = por %p351, %p352
      %p355 = scmp.ne.s32.totalorder %s338, %s354
      %p356 = scmp.eq.s32.totalorder %s32, 0
      %p357 = por %p355, %p356
      %s358 = ssub.s32 %s34, %s41
      %p359 = scmp.eq.s32.totalorder %s358, 0
      %s361 = sadd.s32 %s360, 1
      %s362 = scalar_select %p359, %s360, %s361
      %p365 = pneg %p359
      %p366 = scmp.eq.s32.totalorder %s26, 3
      %p367 = por %p365, %p366
      %p368 = scmp.ne.s32.totalorder %s360, %s363
      %p369 = scmp.eq.s32.totalorder %s26, 0
      %p370 = por %p368, %p369
      %p371 = scmp.ne.s32.totalorder %s360, %s363
      %p372 = scmp.eq.s32.totalorder %s31, 3
      %p373 = por %p371, %p372
      %p374 = scmp.ne.s32.totalorder %s363, %s364
      %p375 = scmp.eq.s32.totalorder %s31, 0
      %p376 = por %p374, %p375
      %p377 = scmp.ne.s32.totalorder %s363, %s364
      %p378 = scmp.eq.s32.totalorder %s32, 3
      %p379 = por %p377, %p378
      %p381 = scmp.ne.s32.totalorder %s364, %s380
      %p382 = scmp.eq.s32.totalorder %s32, 0
      %p383 = por %p381, %p382
      %s384 = ssub.s32 %s34, %s41
      %p385 = scmp.eq.s32.totalorder %s384, 0
      %s387 = sadd.s32 %s386, 1
      %s388 = scalar_select %p385, %s386, %s387
      %p391 = pneg %p385
      %p392 = scmp.eq.s32.totalorder %s26, 3
      %p393 = por %p391, %p392
      %p394 = scmp.ne.s32.totalorder %s386, %s389
      %p395 = scmp.eq.s32.totalorder %s26, 0
      %p396 = por %p394, %p395
      %p397 = scmp.ne.s32.totalorder %s386, %s389
      %p398 = scmp.eq.s32.totalorder %s31, 3
      %p399 = por %p397, %p398
      %p400 = scmp.ne.s32.totalorder %s389, %s390
      %p401 = scmp.eq.s32.totalorder %s31, 0
      %p402 = por %p400, %p401
      %p403 = scmp.ne.s32.totalorder %s389, %s390
      %p404 = scmp.eq.s32.totalorder %s32, 3
      %p405 = por %p403, %p404
      %p407 = scmp.ne.s32.totalorder %s390, %s406
      %p408 = scmp.eq.s32.totalorder %s32, 0
      %p409 = por %p407, %p408
      %s410 = ssub.s32 %s33, %s45
      %p411 = scmp.eq.s32.totalorder %s410, 0
      %s413 = sadd.s32 %s412, 1
      %s414 = scalar_select %p411, %s412, %s413
      %p417 = pneg %p411
      %p418 = scmp.eq.s32.totalorder %s26, 3
      %p419 = por %p417, %p418
      %p420 = scmp.ne.s32.totalorder %s412, %s415
      %p421 = scmp.eq.s32.totalorder %s26, 0
      %p422 = por %p420, %p421
      %p423 = scmp.ne.s32.totalorder %s412, %s415
      %p424 = scmp.eq.s32.totalorder %s31, 3
      %p425 = por %p423, %p424
      %p426 = scmp.ne.s32.totalorder %s415, %s416
      %p427 = scmp.eq.s32.totalorder %s31, 0
      %p428 = por %p426, %p427
      %p429 = scmp.ne.s32.totalorder %s415, %s416
      %p430 = scmp.eq.s32.totalorder %s32, 3
      %p431 = por %p429, %p430
      %p433 = scmp.ne.s32.totalorder %s416, %s432
      %p434 = scmp.eq.s32.totalorder %s32, 0
      %p435 = por %p433, %p434
      %p436 = scmp.le.s32.totalorder 1, %s26
      %p437 = scmp.lt.s32.totalorder %s26, 5
      %p438 = pnand %p436, %p437
      %p439 = pneg %p438
      // Predicated region
      $region9: #{tpu_custom_call.1} parent=5 // pred_check
        _
      $region10: #{tpu_custom_call.1} parent=5 // pred_check_branch
        %441 = sbr.rel (%p438) target = $region12
      $region11: #{tpu_custom_call.1} parent=5 // pred_region
        %s442 = ssub.s32 %s26, 1
      $region12: #{tpu_custom_call.1} parent=5 // pred_fallthru
        _
      %p443 = scmp.lt.s32.totalorder %s26, 4
      // Predicated region
      $region13: #{tpu_custom_call.1} parent=5 // pred_check
        %p444 = pneg %p443
      $region14: #{tpu_custom_call.1} parent=5 // pred_check_branch
        %446 = sbr.rel (%p444) target = $region16
      $region15: #{tpu_custom_call.1} parent=5 // pred_region
        // Predicated region
        $region17: #{tpu_custom_call.1} parent=15 // pred_check
          %p447 = pneg %p58
        $region18: #{tpu_custom_call.1} parent=15 // pred_check_branch
          %449 = sbr.rel (%p447) target = $region20
        $region19: #{tpu_custom_call.1} parent=15 // pred_region
          %s450 = sand.u32 %s48, 1
          %s451 = scalar_lea.sflag [#allocation4], %s450
          %s452 = sand.u32 %s48, 1
          %s453 = smul.addr %s452, 8
          %s454 = scalar_lea.vmem [#allocation3], %s453
          %s456 = ssub.s32 128, 128
          %457 = vsyncadd %s451, %s456
          %s458 = smul.addr %s33, 128
          %s459 = scalar_lea.hbm %s0, %s458
          %s461 = sshll.u32 %s454, 4
          %s462 = int_to_ptr.vmem [resolvable:$true] %s461
          %464 = dma.hbm_to_vmem [thread:$0]  %s459, 128, %s462, %s451
        $region20: #{tpu_custom_call.1} parent=15 // pred_fallthru
          _
        // Predicated region
        $region21: #{tpu_custom_call.1} parent=15 // pred_check
          %p465 = pneg %p84
        $region22: #{tpu_custom_call.1} parent=15 // pred_check_branch
          %467 = sbr.rel (%p465) target = $region24
        $region23: #{tpu_custom_call.1} parent=15 // pred_region
          %p468 = scmp.lt.s32.totalorder %s33, 1
          %s469 = scalar_select %p468, %s33, 1
          %s470 = scalar_lea.vmem %s1, %s469
        $region24: #{tpu_custom_call.1} parent=15 // pred_fallthru
          _
        // Predicated region
        $region25: #{tpu_custom_call.1} parent=15 // pred_check
          %p471 = pneg %p110
        $region26: #{tpu_custom_call.1} parent=15 // pred_check_branch
          %473 = sbr.rel (%p471) target = $region28
        $region27: #{tpu_custom_call.1} parent=15 // pred_region
          %p474 = scmp.lt.s32.totalorder %s34, 1
          %s475 = scalar_select %p474, %s34, 1
          %s476 = smul.addr %s475, 4
          %s477 = smul.addr %s476, 4
          %s478 = scalar_lea.vmem %s2, %s477
        $region28: #{tpu_custom_call.1} parent=15 // pred_fallthru
          _
        // Predicated region
        $region29: #{tpu_custom_call.1} parent=15 // pred_check
          %p479 = pneg %p136
        $region30: #{tpu_custom_call.1} parent=15 // pred_check_branch
          %481 = sbr.rel (%p479) target = $region32
        $region31: #{tpu_custom_call.1} parent=15 // pred_region
          %p482 = scmp.lt.s32.totalorder %s34, 1
          %s483 = scalar_select %p482, %s34, 1
          %s484 = scalar_lea.vmem %s3, %s483
        $region32: #{tpu_custom_call.1} parent=15 // pred_fallthru
          _
        // Predicated region
        $region33: #{tpu_custom_call.1} parent=15 // pred_check
          %p485 = pneg %p162
        $region34: #{tpu_custom_call.1} parent=15 // pred_check_branch
          %487 = sbr.rel (%p485) target = $region36
        $region35: #{tpu_custom_call.1} parent=15 // pred_region
          %p488 = scmp.lt.s32.totalorder %s34, 1
          %s489 = scalar_select %p488, %s34, 1
          %s490 = smul.addr %s489, 4
          %s491 = smul.addr %s490, 4
          %s492 = scalar_lea.vmem %s4, %s491
        $region36: #{tpu_custom_call.1} parent=15 // pred_fallthru
          _
        // Predicated region
        $region37: #{tpu_custom_call.1} parent=15 // pred_check
          %p493 = pneg %p188
        $region38: #{tpu_custom_call.1} parent=15 // pred_check_branch
          %495 = sbr.rel (%p493) target = $region40
        $region39: #{tpu_custom_call.1} parent=15 // pred_region
          %p496 = scmp.lt.s32.totalorder %s34, 1
          %s497 = scalar_select %p496, %s34, 1
          %s498 = scalar_lea.vmem %s5, %s497
        $region40: #{tpu_custom_call.1} parent=15 // pred_fallthru
          _
        // Predicated region
        $region41: #{tpu_custom_call.1} parent=15 // pred_check
          %p499 = pneg %p214
        $region42: #{tpu_custom_call.1} parent=15 // pred_check_branch
          %501 = sbr.rel (%p499) target = $region44
        $region43: #{tpu_custom_call.1} parent=15 // pred_region
          %p502 = scmp.lt.s32.totalorder %s34, 1
          %s503 = scalar_select %p502, %s34, 1
          %s504 = smul.addr %s503, 4
          %s505 = smul.addr %s504, 4
          %s506 = scalar_lea.vmem %s6, %s505
        $region44: #{tpu_custom_call.1} parent=15 // pred_fallthru
          _
        // Predicated region
        $region45: #{tpu_custom_call.1} parent=15 // pred_check
          %p507 = pneg %p240
        $region46: #{tpu_custom_call.1} parent=15 // pred_check_branch
          %509 = sbr.rel (%p507) target = $region48
        $region47: #{tpu_custom_call.1} parent=15 // pred_region
          %p510 = scmp.lt.s32.totalorder %s34, 1
          %s511 = scalar_select %p510, %s34, 1
          %s512 = scalar_lea.vmem %s7, %s511
        $region48: #{tpu_custom_call.1} parent=15 // pred_fallthru
          _
        // Predicated region
        $region49: #{tpu_custom_call.1} parent=15 // pred_check
          %p513 = pneg %p266
        $region50: #{tpu_custom_call.1} parent=15 // pred_check_branch
          %515 = sbr.rel (%p513) target = $region52
        $region51: #{tpu_custom_call.1} parent=15 // pred_region
          %p516 = scmp.lt.s32.totalorder %s34, 1
          %s517 = scalar_select %p516, %s34, 1
          %s518 = smul.addr %s517, 8
          %s519 = smul.addr %s518, 4
          %s520 = scalar_lea.vmem %s8, %s519
        $region52: #{tpu_custom_call.1} parent=15 // pred_fallthru
          _
        // Predicated region
        $region53: #{tpu_custom_call.1} parent=15 // pred_check
          %p521 = pneg %p292
        $region54: #{tpu_custom_call.1} parent=15 // pred_check_branch
          %523 = sbr.rel (%p521) target = $region56
        $region55: #{tpu_custom_call.1} parent=15 // pred_region
          %p524 = scmp.lt.s32.totalorder %s34, 1
          %s525 = scalar_select %p524, %s34, 1
          %s526 = scalar_lea.vmem %s9, %s525
        $region56: #{tpu_custom_call.1} parent=15 // pred_fallthru
          _
        // Predicated region
        $region57: #{tpu_custom_call.1} parent=15 // pred_check
          %p527 = pneg %p318
        $region58: #{tpu_custom_call.1} parent=15 // pred_check_branch
          %529 = sbr.rel (%p527) target = $region60
        $region59: #{tpu_custom_call.1} parent=15 // pred_region
          %p530 = scmp.lt.s32.totalorder %s34, 1
          %s531 = scalar_select %p530, %s34, 1
          %s532 = scalar_lea.vmem %s10, %s531
        $region60: #{tpu_custom_call.1} parent=15 // pred_fallthru
          _
        // Predicated region
        $region61: #{tpu_custom_call.1} parent=15 // pred_check
          %p533 = pneg %p344
        $region62: #{tpu_custom_call.1} parent=15 // pred_check_branch
          %535 = sbr.rel (%p533) target = $region64
        $region63: #{tpu_custom_call.1} parent=15 // pred_region
          %p536 = scmp.lt.s32.totalorder %s34, 1
          %s537 = scalar_select %p536, %s34, 1
          %s538 = scalar_lea.vmem %s11, %s537
        $region64: #{tpu_custom_call.1} parent=15 // pred_fallthru
          _
        // Predicated region
        $region65: #{tpu_custom_call.1} parent=15 // pred_check
          %p539 = pneg %p370
        $region66: #{tpu_custom_call.1} parent=15 // pred_check_branch
          %541 = sbr.rel (%p539) target = $region68
        $region67: #{tpu_custom_call.1} parent=15 // pred_region
          %p542 = scmp.lt.s32.totalorder %s34, 1
          %s543 = scalar_select %p542, %s34, 1
          %s544 = scalar_lea.vmem %s12, %s543
        $region68: #{tpu_custom_call.1} parent=15 // pred_fallthru
          _
        // Predicated region
        $region69: #{tpu_custom_call.1} parent=15 // pred_check
          %p545 = pneg %p396
        $region70: #{tpu_custom_call.1} parent=15 // pred_check_branch
          %547 = sbr.rel (%p545) target = $region72
        $region71: #{tpu_custom_call.1} parent=15 // pred_region
          %p548 = scmp.lt.s32.totalorder %s34, 1
          %s549 = scalar_select %p548, %s34, 1
          %s550 = scalar_lea.vmem %s13, %s549
        $region72: #{tpu_custom_call.1} parent=15 // pred_fallthru
          _
      $region16: #{tpu_custom_call.1} parent=5 // pred_fallthru
        _
      %p551 = scmp.le.s32.totalorder 1, %s26
      %p552 = scmp.lt.s32.totalorder %s26, 5
      %p553 = pnand %p551, %p552
      %p554 = pneg %p553
      // Predicated region
      $region73: #{tpu_custom_call.1} parent=5 // pred_check
        _
      $region74: #{tpu_custom_call.1} parent=5 // pred_check_branch
        %556 = sbr.rel (%p553) target = $region76
      $region75: #{tpu_custom_call.1} parent=5 // pred_region
        %s557 = ssub.s32 %s26, 1
        %s558 = sand.u32 %s51, 1
        %s559 = scalar_lea.sflag [#allocation4], %s558
        %s560 = sand.u32 %s51, 1
        %s561 = smul.addr %s560, 8
        %s562 = scalar_lea.vmem [#allocation3], %s561
        // Predicated region
        $region77: #{tpu_custom_call.1} parent=75 // pred_check
          %p563 = pneg %p64
        $region78: #{tpu_custom_call.1} parent=75 // pred_check_branch
          %565 = sbr.rel (%p563) target = $region80
        $region79: #{tpu_custom_call.1} parent=75 // pred_region
          %566 = dma.done %s559, 128
        $region80: #{tpu_custom_call.1} parent=75 // pred_fallthru
          _
        %s567 = sand.u32 %s51, 1
        %s568 = scalar_lea.sflag [#allocation4], %s567
        %s569 = sand.u32 %s51, 1
        %s570 = smul.addr %s569, 8
        %s571 = scalar_lea.vmem [#allocation3], %s570
        %p572 = pneg %p64
        %p573 = pneg %p61
        %p574 = scmp.lt.s32.totalorder %s35, 1
        %s575 = scalar_select %p574, %s35, 1
        %s576 = scalar_lea.vmem %s1, %s575
        %p577 = pneg %p90
        %p578 = pneg %p87
        %p579 = scmp.lt.s32.totalorder %s36, 1
        %s580 = scalar_select %p579, %s36, 1
        %s581 = smul.addr %s580, 4
        %s582 = smul.addr %s581, 4
        %s583 = scalar_lea.vmem %s2, %s582
        %p584 = pneg %p116
        %p585 = pneg %p113
        %p586 = scmp.lt.s32.totalorder %s36, 1
        %s587 = scalar_select %p586, %s36, 1
        %s588 = scalar_lea.vmem %s3, %s587
        %p589 = pneg %p142
        %p590 = pneg %p139
        %p591 = scmp.lt.s32.totalorder %s36, 1
        %s592 = scalar_select %p591, %s36, 1
        %s593 = smul.addr %s592, 4
        %s594 = smul.addr %s593, 4
        %s595 = scalar_lea.vmem %s4, %s594
        %p596 = pneg %p168
        %p597 = pneg %p165
        %p598 = scmp.lt.s32.totalorder %s36, 1
        %s599 = scalar_select %p598, %s36, 1
        %s600 = scalar_lea.vmem %s5, %s599
        %p601 = pneg %p194
        %p602 = pneg %p191
        %p603 = scmp.lt.s32.totalorder %s36, 1
        %s604 = scalar_select %p603, %s36, 1
        %s605 = smul.addr %s604, 4
        %s606 = smul.addr %s605, 4
        %s607 = scalar_lea.vmem %s6, %s606
        %p608 = pneg %p220
        %p609 = pneg %p217
        %p610 = scmp.lt.s32.totalorder %s36, 1
        %s611 = scalar_select %p610, %s36, 1
        %s612 = scalar_lea.vmem %s7, %s611
        %p613 = pneg %p246
        %p614 = pneg %p243
        %p615 = scmp.lt.s32.totalorder %s36, 1
        %s616 = scalar_select %p615, %s36, 1
        %s617 = smul.addr %s616, 8
        %s618 = smul.addr %s617, 4
        %s619 = scalar_lea.vmem %s8, %s618
        %p620 = pneg %p272
        %p621 = pneg %p269
        %p622 = scmp.lt.s32.totalorder %s36, 1
        %s623 = scalar_select %p622, %s36, 1
        %s624 = scalar_lea.vmem %s9, %s623
        %p625 = pneg %p298
        %p626 = pneg %p295
        %p627 = scmp.lt.s32.totalorder %s36, 1
        %s628 = scalar_select %p627, %s36, 1
        %s629 = scalar_lea.vmem %s10, %s628
        %p630 = pneg %p324
        %p631 = pneg %p321
        %p632 = scmp.lt.s32.totalorder %s36, 1
        %s633 = scalar_select %p632, %s36, 1
        %s634 = scalar_lea.vmem %s11, %s633
        %p635 = pneg %p350
        %p636 = pneg %p347
        %p637 = scmp.lt.s32.totalorder %s36, 1
        %s638 = scalar_select %p637, %s36, 1
        %s639 = scalar_lea.vmem %s12, %s638
        %p640 = pneg %p376
        %p641 = pneg %p373
        %p642 = scmp.lt.s32.totalorder %s36, 1
        %s643 = scalar_select %p642, %s36, 1
        %s644 = scalar_lea.vmem %s13, %s643
        %p645 = pneg %p402
        %p646 = pneg %p399
        %p647 = pneg %p428
        %p648 = pneg %p425
        %s649 = sand.u32 %s415, 1
        %s650 = scalar_lea.sflag [#allocation5], %s649
        %s651 = sand.u32 %s415, 1
        %s652 = smul.addr %s651, 8
        %s653 = scalar_lea.vmem [#allocation6], %s652
        %p654 = scmp.lt.s32.totalorder %s35, 1
        %s655 = scalar_select %p654, %s35, 1
        %s656 = scalar_lea.vmem %s1, %s655
        %p657 = scmp.lt.s32.totalorder %s36, 1
        %s658 = scalar_select %p657, %s36, 1
        %s659 = smul.addr %s658, 4
        %s660 = smul.addr %s659, 4
        %s661 = scalar_lea.vmem %s2, %s660
        %p662 = scmp.lt.s32.totalorder %s36, 1
        %s663 = scalar_select %p662, %s36, 1
        %s664 = scalar_lea.vmem %s3, %s663
        %p665 = scmp.lt.s32.totalorder %s36, 1
        %s666 = scalar_select %p665, %s36, 1
        %s667 = smul.addr %s666, 4
        %s668 = smul.addr %s667, 4
        %s669 = scalar_lea.vmem %s4, %s668
        %p670 = scmp.lt.s32.totalorder %s36, 1
        %s671 = scalar_select %p670, %s36, 1
        %s672 = scalar_lea.vmem %s5, %s671
        %p673 = scmp.lt.s32.totalorder %s36, 1
        %s674 = scalar_select %p673, %s36, 1
        %s675 = smul.addr %s674, 4
        %s676 = smul.addr %s675, 4
        %s677 = scalar_lea.vmem %s6, %s676
        %p678 = scmp.lt.s32.totalorder %s36, 1
        %s679 = scalar_select %p678, %s36, 1
        %s680 = scalar_lea.vmem %s7, %s679
        %p681 = scmp.lt.s32.totalorder %s36, 1
        %s682 = scalar_select %p681, %s36, 1
        %s683 = smul.addr %s682, 8
        %s684 = smul.addr %s683, 4
        %s685 = scalar_lea.vmem %s8, %s684
        %p686 = scmp.lt.s32.totalorder %s36, 1
        %s687 = scalar_select %p686, %s36, 1
        %s688 = scalar_lea.vmem %s9, %s687
        %p689 = scmp.lt.s32.totalorder %s36, 1
        %s690 = scalar_select %p689, %s36, 1
        %s691 = scalar_lea.vmem %s10, %s690
        %p692 = scmp.lt.s32.totalorder %s36, 1
        %s693 = scalar_select %p692, %s36, 1
        %s694 = scalar_lea.vmem %s11, %s693
        %p695 = scmp.lt.s32.totalorder %s36, 1
        %s696 = scalar_select %p695, %s36, 1
        %s697 = scalar_lea.vmem %s12, %s696
        %p698 = scmp.lt.s32.totalorder %s36, 1
        %s699 = scalar_select %p698, %s36, 1
        %s700 = scalar_lea.vmem %s13, %s699
        %p702 = scmp.eq.s32.totalorder %s36, 0
        // Predicated region
        $region81: #{tpu_custom_call.1} parent=75 // pred_check
          %p703 = pneg %p702
        $region82: #{tpu_custom_call.1} parent=75 // pred_check_branch
          %705 = sbr.rel (%p703) target = $region84
        $region83: #{tpu_custom_call.1} parent=75 // pred_region
          %v706 = vld [vmem:[%s562] sm:$0xff]
          %vm707 = vcmask 261120
          %708 = vst.msk [vmem:[%s653] sm:$0xff] %vm707, %v706
        $region84: #{tpu_custom_call.1} parent=75 // pred_fallthru
          _
        %v709 = vld [vmem:[%s653] sm:$0xff]
        %v710 = vpack.c.bf16 %v709, %v709
        %v711 = vld [vmem:[%s661] sm:$0xf]
        %v712 = vld [vmem:[%s661 + $0x4] sm:$0xf]
        %v713 = vld [vmem:[%s661 + $0x8] sm:$0xf]
        %v714 = vld [vmem:[%s661 + $0xc] sm:$0xf]
        %v715 = vld [vmem:[%s664] sm:$0x1]
        %v717 = vlaneseq
        %v718 = vshrl.u32 %v717, 7
        %v719 = vsub.s32 0, %v718
        %v720 = vrot.slane %v715, %v719
        %v726 = vunpack.c.l.b16 %v711
        %v727 = vunpack.c.l.b16 %v712
        %v728 = vunpack.c.l.b16 %v713
        %v729 = vunpack.c.l.b16 %v714
        %v730 = vpack.c.b16 %v727, %v726
        %v731 = vpack.c.b16 %v729, %v728
        %vm734 = vcmask 261120
        %v736 = vsel %vm734, %v710, 0
        %738 = vmatprep.subr.bf16.mxu0 0
        %739 = vmatpush1.bf16.msra.mxu0 %v730
        %740 = vmatprep.subr.bf16.mxu0 0
        %741 = vmatpush1.bf16.msra.mxu0 %v731
        %742 = vmatprep.subr.bf16.mxu0 0
        %743 = vmatpush1.bf16.msra.mxu0 0
        %744 = vmatprep.subr.bf16.mxu0 0
        %745 = vmatpush1.bf16.msra.mxu0 0
        %746 = vmatprep.subr.bf16.mxu0 0
        %747 = vmatpush1.bf16.msra.mxu0 0
        %748 = vmatprep.subr.bf16.mxu0 0
        %749 = vmatpush1.bf16.msra.mxu0 0
        %750 = vmatprep.subr.bf16.mxu0 0
        %751 = vmatpush1.bf16.msra.mxu0 0
        %752 = vmatprep.subr.bf16.mxu0 0
        %753 = vmatpush1.bf16.msra.mxu0 0
        %754 = vmatprep.subr.bf16.mxu0 0
        %755 = vmatpush1.bf16.msra.mxu0 0
        %756 = vmatprep.subr.bf16.mxu0 0
        %757 = vmatpush1.bf16.msra.mxu0 0
        %758 = vmatprep.subr.bf16.mxu0 0
        %759 = vmatpush1.bf16.msra.mxu0 0
        %760 = vmatprep.subr.bf16.mxu0 0
        %761 = vmatpush1.bf16.msra.mxu0 0
        %762 = vmatprep.subr.bf16.mxu0 0
        %763 = vmatpush1.bf16.msra.mxu0 0
        %764 = vmatprep.subr.bf16.mxu0 0
        %765 = vmatpush1.bf16.msra.mxu0 0
        %766 = vmatprep.subr.bf16.mxu0 0
        %767 = vmatpush1.bf16.msra.mxu0 0
        %768 = vmatprep.subr.bf16.mxu0 0
        %769 = vmatpush1.bf16.msra.mxu0 0
        %770 = vmatprep.mubr.bf16.mxu0 0
        %771 = vmatmul.mubr.bf16.gmra.mrb[0].mxu0 %v736
        %v772 = vpop.f32.mrb[0].mxu0
        %v773 = vadd.f32 %v720, %v772
        %v774 = vpop.f32.mrb[0].mxu0
        %v775 = vpop.f32.mrb[0].mxu0
        %v776 = vpop.f32.mrb[0].mxu0
        %777 = vdwg.mxu0
        %v778 = vmul.f32 %v773, 0.35355338
        %v779 = vpack.c.bf16 %v778, %v778
        %v780 = vpack.c.bf16 %v773, %v773
        %v781 = vld [vmem:[%s656] sm:$0x1]
        %v783 = vlaneseq
        %v784 = vshrl.u32 %v783, 7
        %v785 = vsub.s32 0, %v784
        %v786 = vrot.slane %v781, %v785
        %789 = vrot.lane.b32.xlu0 %v780, 96
        %v790 = vpop.permute.xlu0 %789
        %vm791 = vcmask 64512
        %v793 = vsel %vm791, %v779, 0
        %v796 = vsel %vm791, %v790, 0
        %798 = vmatprep.subr.bf16.mxu0 0
        %799 = vmatpush1.bf16.xpose.msra.mxu0 %v796
        %800 = vmatprep.subr.bf16.mxu0 0
        %801 = vmatpush1.bf16.xpose.msra.mxu0 0
        %802 = vmatprep.subr.bf16.mxu0 0
        %803 = vmatpush1.bf16.xpose.msra.mxu0 0
        %804 = vmatprep.subr.bf16.mxu0 0
        %805 = vmatpush1.bf16.xpose.msra.mxu0 0
        %806 = vmatprep.subr.bf16.mxu0 0
        %807 = vmatpush1.bf16.xpose.msra.mxu0 0
        %808 = vmatprep.subr.bf16.mxu0 0
        %809 = vmatpush1.bf16.xpose.msra.mxu0 0
        %810 = vmatprep.subr.bf16.mxu0 0
        %811 = vmatpush1.bf16.xpose.msra.mxu0 0
        %812 = vmatprep.subr.bf16.mxu0 0
        %813 = vmatpush1.bf16.xpose.msra.mxu0 0
        %814 = vmatprep.subr.bf16.mxu0 0
        %815 = vmatpush1.bf16.xpose.msra.mxu0 0
        %816 = vmatprep.subr.bf16.mxu0 0
        %817 = vmatpush1.bf16.xpose.msra.mxu0 0
        %818 = vmatprep.subr.bf16.mxu0 0
        %819 = vmatpush1.bf16.xpose.msra.mxu0 0
        %820 = vmatprep.subr.bf16.mxu0 0
        %821 = vmatpush1.bf16.xpose.msra.mxu0 0
        %822 = vmatprep.subr.bf16.mxu0 0
        %823 = vmatpush1.bf16.xpose.msra.mxu0 0
        %824 = vmatprep.subr.bf16.mxu0 0
        %825 = vmatpush1.bf16.xpose.msra.mxu0 0
        %826 = vmatprep.subr.bf16.mxu0 0
        %827 = vmatpush1.bf16.xpose.msra.mxu0 0
        %828 = vmatprep.subr.bf16.mxu0 0
        %829 = vmatpush1.bf16.xpose.msra.mxu0 0
        %830 = vmatprep.mubr.bf16.mxu0 0
        %831 = vmatmul.mubr.bf16.gmra.mrb[0].mxu0 %v793
        %v832 = vpop.f32.mrb[0].mxu0
        %v833 = vadd.f32 %v786, %v832
        %v834 = vpop.f32.mrb[0].mxu0
        %v835 = vpop.f32.mrb[0].mxu0
        %v836 = vpop.f32.mrb[0].mxu0
        %837 = vdwg.mxu0
        %v838 = vsel %vm791, %v833, -inf
        %839 = vmax.xlane.f32.xlu0 %v838
        %v840 = vpop.xlane.xlu0 %839
        %v841 = vsub.f32 %v833, %v840
        %v842 = vmul.f32 %v841, 1.442695
        %v843 = vpow.pop %v842
        %v844 = vsel %vm791, %v843, 0.0
        %845 = vadd.xlane.f32.xlu0 %v844
        %v846 = vpop.xlane.xlu0 %845
        %v847 = vrcp.pop %v846
        %v848 = vmul.f32 %v843, %v847
        %v849 = vpack.c.bf16 %v848, %v848
        %850 = vrot.lane.b32.xlu0 %v780, 64
        %v851 = vpop.permute.xlu0 %850
        %v853 = vsel %vm791, %v849, 0
        %vm855 = vcmask 1043456
        %v857 = vsel %vm855, %v851, 0
        %859 = vmatprep.subr.bf16.mxu0 0
        %860 = vmatpush1.bf16.msra.mxu0 %v857
        %861 = vmatprep.subr.bf16.mxu0 0
        %862 = vmatpush1.bf16.msra.mxu0 0
        %863 = vmatprep.subr.bf16.mxu0 0
        %864 = vmatpush1.bf16.msra.mxu0 0
        %865 = vmatprep.subr.bf16.mxu0 0
        %866 = vmatpush1.bf16.msra.mxu0 0
        %867 = vmatprep.subr.bf16.mxu0 0
        %868 = vmatpush1.bf16.msra.mxu0 0
        %869 = vmatprep.subr.bf16.mxu0 0
        %870 = vmatpush1.bf16.msra.mxu0 0
        %871 = vmatprep.subr.bf16.mxu0 0
        %872 = vmatpush1.bf16.msra.mxu0 0
        %873 = vmatprep.subr.bf16.mxu0 0
        %874 = vmatpush1.bf16.msra.mxu0 0
        %875 = vmatprep.subr.bf16.mxu0 0
        %876 = vmatpush1.bf16.msra.mxu0 0
        %877 = vmatprep.subr.bf16.mxu0 0
        %878 = vmatpush1.bf16.msra.mxu0 0
        %879 = vmatprep.subr.bf16.mxu0 0
        %880 = vmatpush1.bf16.msra.mxu0 0
        %881 = vmatprep.subr.bf16.mxu0 0
        %882 = vmatpush1.bf16.msra.mxu0 0
        %883 = vmatprep.subr.bf16.mxu0 0
        %884 = vmatpush1.bf16.msra.mxu0 0
        %885 = vmatprep.subr.bf16.mxu0 0
        %886 = vmatpush1.bf16.msra.mxu0 0
        %887 = vmatprep.subr.bf16.mxu0 0
        %888 = vmatpush1.bf16.msra.mxu0 0
        %889 = vmatprep.subr.bf16.mxu0 0
        %890 = vmatpush1.bf16.msra.mxu0 0
        %891 = vmatprep.mubr.bf16.mxu0 0
        %892 = vmatmul.mubr.bf16.gmra.mrb[0].mxu0 %v853
        %v893 = vpop.f32.mrb[0].mxu0
        %v894 = vadd.f32 0.0, %v893
        %v895 = vpop.f32.mrb[0].mxu0
        %v896 = vpop.f32.mrb[0].mxu0
        %v897 = vpop.f32.mrb[0].mxu0
        %898 = vdwg.mxu0
        %v899 = vpack.c.bf16 %v894, %v894
        %vm900 = vcmask 60416
        %901 = vst.msk [vmem:[#allocation2] sm:$0xf] %vm900, %v899
        %903 = vrot.lane.b32.xlu0 %v779, 120
        %v904 = vpop.permute.xlu0 %903
        %905 = vrot.lane.b32.xlu0 %v780, 88
        %v906 = vpop.permute.xlu0 %905
        %v908 = vsel %vm791, %v904, 0
        %v911 = vsel %vm791, %v906, 0
        %913 = vmatprep.subr.bf16.mxu0 0
        %914 = vmatpush1.bf16.xpose.msra.mxu0 %v911
        %915 = vmatprep.subr.bf16.mxu0 0
        %916 = vmatpush1.bf16.xpose.msra.mxu0 0
        %917 = vmatprep.subr.bf16.mxu0 0
        %918 = vmatpush1.bf16.xpose.msra.mxu0 0
        %919 = vmatprep.subr.bf16.mxu0 0
        %920 = vmatpush1.bf16.xpose.msra.mxu0 0
        %921 = vmatprep.subr.bf16.mxu0 0
        %922 = vmatpush1.bf16.xpose.msra.mxu0 0
        %923 = vmatprep.subr.bf16.mxu0 0
        %924 = vmatpush1.bf16.xpose.msra.mxu0 0
        %925 = vmatprep.subr.bf16.mxu0 0
        %926 = vmatpush1.bf16.xpose.msra.mxu0 0
        %927 = vmatprep.subr.bf16.mxu0 0
        %928 = vmatpush1.bf16.xpose.msra.mxu0 0
        %929 = vmatprep.subr.bf16.mxu0 0
        %930 = vmatpush1.bf16.xpose.msra.mxu0 0
        %931 = vmatprep.subr.bf16.mxu0 0
        %932 = vmatpush1.bf16.xpose.msra.mxu0 0
        %933 = vmatprep.subr.bf16.mxu0 0
        %934 = vmatpush1.bf16.xpose.msra.mxu0 0
        %935 = vmatprep.subr.bf16.mxu0 0
        %936 = vmatpush1.bf16.xpose.msra.mxu0 0
        %937 = vmatprep.subr.bf16.mxu0 0
        %938 = vmatpush1.bf16.xpose.msra.mxu0 0
        %939 = vmatprep.subr.bf16.mxu0 0
        %940 = vmatpush1.bf16.xpose.msra.mxu0 0
        %941 = vmatprep.subr.bf16.mxu0 0
        %942 = vmatpush1.bf16.xpose.msra.mxu0 0
        %943 = vmatprep.subr.bf16.mxu0 0
        %944 = vmatpush1.bf16.xpose.msra.mxu0 0
        %945 = vmatprep.mubr.bf16.mxu0 0
        %946 = vmatmul.mubr.bf16.gmra.mrb[0].mxu0 %v908
        %v947 = vpop.f32.mrb[0].mxu0
        %v948 = vadd.f32 %v786, %v947
        %v949 = vpop.f32.mrb[0].mxu0
        %v950 = vpop.f32.mrb[0].mxu0
        %v951 = vpop.f32.mrb[0].mxu0
        %952 = vdwg.mxu0
        %v953 = vsel %vm791, %v948, -inf
        %954 = vmax.xlane.f32.xlu0 %v953
        %v955 = vpop.xlane.xlu0 %954
        %v956 = vsub.f32 %v948, %v955
        %v957 = vmul.f32 %v956, 1.442695
        %v958 = vpow.pop %v957
        %v959 = vsel %vm791, %v958, 0.0
        %960 = vadd.xlane.f32.xlu0 %v959
        %v961 = vpop.xlane.xlu0 %960
        %v962 = vrcp.pop %v961
        %v963 = vmul.f32 %v958, %v962
        %v964 = vpack.c.bf16 %v963, %v963
        %965 = vrot.lane.b32.xlu0 %v780, 56
        %v966 = vpop.permute.xlu0 %965
        %v968 = vsel %vm791, %v964, 0
        %v971 = vsel %vm855, %v966, 0
        %973 = vmatprep.subr.bf16.mxu0 0
        %974 = vmatpush1.bf16.msra.mxu0 %v971
        %975 = vmatprep.subr.bf16.mxu0 0
        %976 = vmatpush1.bf16.msra.mxu0 0
        %977 = vmatprep.subr.bf16.mxu0 0
        %978 = vmatpush1.bf16.msra.mxu0 0
        %979 = vmatprep.subr.bf16.mxu0 0
        %980 = vmatpush1.bf16.msra.mxu0 0
        %981 = vmatprep.subr.bf16.mxu0 0
        %982 = vmatpush1.bf16.msra.mxu0 0
        %983 = vmatprep.subr.bf16.mxu0 0
        %984 = vmatpush1.bf16.msra.mxu0 0
        %985 = vmatprep.subr.bf16.mxu0 0
        %986 = vmatpush1.bf16.msra.mxu0 0
        %987 = vmatprep.subr.bf16.mxu0 0
        %988 = vmatpush1.bf16.msra.mxu0 0
        %989 = vmatprep.subr.bf16.mxu0 0
        %990 = vmatpush1.bf16.msra.mxu0 0
        %991 = vmatprep.subr.bf16.mxu0 0
        %992 = vmatpush1.bf16.msra.mxu0 0
        %993 = vmatprep.subr.bf16.mxu0 0
        %994 = vmatpush1.bf16.msra.mxu0 0
        %995 = vmatprep.subr.bf16.mxu0 0
        %996 = vmatpush1.bf16.msra.mxu0 0
        %997 = vmatprep.subr.bf16.mxu0 0
        %998 = vmatpush1.bf16.msra.mxu0 0
        %999 = vmatprep.subr.bf16.mxu0 0
        %1000 = vmatpush1.bf16.msra.mxu0 0
        %1001 = vmatprep.subr.bf16.mxu0 0
        %1002 = vmatpush1.bf16.msra.mxu0 0
        %1003 = vmatprep.subr.bf16.mxu0 0
        %1004 = vmatpush1.bf16.msra.mxu0 0
        %1005 = vmatprep.mubr.bf16.mxu0 0
        %1006 = vmatmul.mubr.bf16.gmra.mrb[0].mxu0 %v968
        %v1007 = vpop.f32.mrb[0].mxu0
        %v1008 = vadd.f32 0.0, %v1007
        %v1009 = vpop.f32.mrb[0].mxu0
        %v1010 = vpop.f32.mrb[0].mxu0
        %v1011 = vpop.f32.mrb[0].mxu0
        %1012 = vdwg.mxu0
        %v1013 = vpack.c.bf16 %v1008, %v1008
        %v1015 = vunpack.c.l.b16 %v1013
        %v1016 = vpack.c.b16 %v1015, %v1015
        %1017 = vrot.lane.b32.xlu0 %v1016, 8
        %v1018 = vpop.permute.xlu0 %1017
        %vm1020 = vcmask 126016
        %1021 = vst.msk [vmem:[#allocation2] sm:$0xf] %vm1020, %v1018
        %1022 = vrot.lane.b32.xlu0 %v779, 112
        %v1023 = vpop.permute.xlu0 %1022
        %1024 = vrot.lane.b32.xlu0 %v780, 80
        %v1025 = vpop.permute.xlu0 %1024
        %v1027 = vsel %vm791, %v1023, 0
        %v1030 = vsel %vm791, %v1025, 0
        %1032 = vmatprep.subr.bf16.mxu0 0
        %1033 = vmatpush1.bf16.xpose.msra.mxu0 %v1030
        %1034 = vmatprep.subr.bf16.mxu0 0
        %1035 = vmatpush1.bf16.xpose.msra.mxu0 0
        %1036 = vmatprep.subr.bf16.mxu0 0
        %1037 = vmatpush1.bf16.xpose.msra.mxu0 0
        %1038 = vmatprep.subr.bf16.mxu0 0
        %1039 = vmatpush1.bf16.xpose.msra.mxu0 0
        %1040 = vmatprep.subr.bf16.mxu0 0
        %1041 = vmatpush1.bf16.xpose.msra.mxu0 0
        %1042 = vmatprep.subr.bf16.mxu0 0
        %1043 = vmatpush1.bf16.xpose.msra.mxu0 0
        %1044 = vmatprep.subr.bf16.mxu0 0
        %1045 = vmatpush1.bf16.xpose.msra.mxu0 0
        %1046 = vmatprep.subr.bf16.mxu0 0
        %1047 = vmatpush1.bf16.xpose.msra.mxu0 0
        %1048 = vmatprep.subr.bf16.mxu0 0
        %1049 = vmatpush1.bf16.xpose.msra.mxu0 0
        %1050 = vmatprep.subr.bf16.mxu0 0
        %1051 = vmatpush1.bf16.xpose.msra.mxu0 0
        %1052 = vmatprep.subr.bf16.mxu0 0
        %1053 = vmatpush1.bf16.xpose.msra.mxu0 0
        %1054 = vmatprep.subr.bf16.mxu0 0
        %1055 = vmatpush1.bf16.xpose.msra.mxu0 0
        %1056 = vmatprep.subr.bf16.mxu0 0
        %1057 = vmatpush1.bf16.xpose.msra.mxu0 0
        %1058 = vmatprep.subr.bf16.mxu0 0
        %1059 = vmatpush1.bf16.xpose.msra.mxu0 0
        %1060 = vmatprep.subr.bf16.mxu0 0
        %1061 = vmatpush1.bf16.xpose.msra.mxu0 0
        %1062 = vmatprep.subr.bf16.mxu0 0
        %1063 = vmatpush1.bf16.xpose.msra.mxu0 0
        %1064 = vmatprep.mubr.bf16.mxu0 0
        %1065 = vmatmul.mubr.bf16.gmra.mrb[0].mxu0 %v1027
        %v1066 = vpop.f32.mrb[0].mxu0
        %v1067 = vadd.f32 %v786, %v1066
        %v1068 = vpop.f32.mrb[0].mxu0
        %v1069 = vpop.f32.mrb[0].mxu0
        %v1070 = vpop.f32.mrb[0].mxu0
        %1071 = vdwg.mxu0
        %v1072 = vsel %vm791, %v1067, -inf
        %1073 = vmax.xlane.f32.xlu0 %v1072
        %v1074 = vpop.xlane.xlu0 %1073
        %v1075 = vsub.f32 %v1067, %v1074
        %v1076 = vmul.f32 %v1075, 1.442695
        %v1077 = vpow.pop %v1076
        %v1078 = vsel %vm791, %v1077, 0.0
        %1079 = vadd.xlane.f32.xlu0 %v1078
        %v1080 = vpop.xlane.xlu0 %1079
        %v1081 = vrcp.pop %v1080
        %v1082 = vmul.f32 %v1077, %v1081
        %v1083 = vpack.c.bf16 %v1082, %v1082
        %1084 = vrot.lane.b32.xlu0 %v780, 48
        %v1085 = vpop.permute.xlu0 %1084
        %v1087 = vsel %vm791, %v1083, 0
        %v1090 = vsel %vm855, %v1085, 0
        %1092 = vmatprep.subr.bf16.mxu0 0
        %1093 = vmatpush1.bf16.msra.mxu0 %v1090
        %1094 = vmatprep.subr.bf16.mxu0 0
        %1095 = vmatpush1.bf16.msra.mxu0 0
        %1096 = vmatprep.subr.bf16.mxu0 0
        %1097 = vmatpush1.bf16.msra.mxu0 0
        %1098 = vmatprep.subr.bf16.mxu0 0
        %1099 = vmatpush1.bf16.msra.mxu0 0
        %1100 = vmatprep.subr.bf16.mxu0 0
        %1101 = vmatpush1.bf16.msra.mxu0 0
        %1102 = vmatprep.subr.bf16.mxu0 0
        %1103 = vmatpush1.bf16.msra.mxu0 0
        %1104 = vmatprep.subr.bf16.mxu0 0
        %1105 = vmatpush1.bf16.msra.mxu0 0
        %1106 = vmatprep.subr.bf16.mxu0 0
        %1107 = vmatpush1.bf16.msra.mxu0 0
        %1108 = vmatprep.subr.bf16.mxu0 0
        %1109 = vmatpush1.bf16.msra.mxu0 0
        %1110 = vmatprep.subr.bf16.mxu0 0
        %1111 = vmatpush1.bf16.msra.mxu0 0
        %1112 = vmatprep.subr.bf16.mxu0 0
        %1113 = vmatpush1.bf16.msra.mxu0 0
        %1114 = vmatprep.subr.bf16.mxu0 0
        %1115 = vmatpush1.bf16.msra.mxu0 0
        %1116 = vmatprep.subr.bf16.mxu0 0
        %1117 = vmatpush1.bf16.msra.mxu0 0
        %1118 = vmatprep.subr.bf16.mxu0 0
        %1119 = vmatpush1.bf16.msra.mxu0 0
        %1120 = vmatprep.subr.bf16.mxu0 0
        %1121 = vmatpush1.bf16.msra.mxu0 0
        %1122 = vmatprep.subr.bf16.mxu0 0
        %1123 = vmatpush1.bf16.msra.mxu0 0
        %1124 = vmatprep.mubr.bf16.mxu0 0
        %1125 = vmatmul.mubr.bf16.gmra.mrb[0].mxu0 %v1087
        %v1126 = vpop.f32.mrb[0].mxu0
        %v1127 = vadd.f32 0.0, %v1126
        %v1128 = vpop.f32.mrb[0].mxu0
        %v1129 = vpop.f32.mrb[0].mxu0
        %v1130 = vpop.f32.mrb[0].mxu0
        %1131 = vdwg.mxu0
        %v1132 = vpack.c.bf16 %v1127, %v1127
        %v1134 = vunpack.c.l.b16 %v1132
        %v1135 = vpack.c.b16 %v1134, %v1134
        %1136 = vrot.lane.b32.xlu0 %v1135, 16
        %v1137 = vpop.permute.xlu0 %1136
        %vm1139 = vcmask 191616
        %1140 = vst.msk [vmem:[#allocation2] sm:$0xf] %vm1139, %v1137
        %1141 = vrot.lane.b32.xlu0 %v779, 104
        %v1142 = vpop.permute.xlu0 %1141
        %1143 = vrot.lane.b32.xlu0 %v780, 72
        %v1144 = vpop.permute.xlu0 %1143
        %v1146 = vsel %vm791, %v1142, 0
        %v1149 = vsel %vm791, %v1144, 0
        %1151 = vmatprep.subr.bf16.mxu0 0
        %1152 = vmatpush1.bf16.xpose.msra.mxu0 %v1149
        %1153 = vmatprep.subr.bf16.mxu0 0
        %1154 = vmatpush1.bf16.xpose.msra.mxu0 0
        %1155 = vmatprep.subr.bf16.mxu0 0
        %1156 = vmatpush1.bf16.xpose.msra.mxu0 0
        %1157 = vmatprep.subr.bf16.mxu0 0
        %1158 = vmatpush1.bf16.xpose.msra.mxu0 0
        %1159 = vmatprep.subr.bf16.mxu0 0
        %1160 = vmatpush1.bf16.xpose.msra.mxu0 0
        %1161 = vmatprep.subr.bf16.mxu0 0
        %1162 = vmatpush1.bf16.xpose.msra.mxu0 0
        %1163 = vmatprep.subr.bf16.mxu0 0
        %1164 = vmatpush1.bf16.xpose.msra.mxu0 0
        %1165 = vmatprep.subr.bf16.mxu0 0
        %1166 = vmatpush1.bf16.xpose.msra.mxu0 0
        %1167 = vmatprep.subr.bf16.mxu0 0
        %1168 = vmatpush1.bf16.xpose.msra.mxu0 0
        %1169 = vmatprep.subr.bf16.mxu0 0
        %1170 = vmatpush1.bf16.xpose.msra.mxu0 0
        %1171 = vmatprep.subr.bf16.mxu0 0
        %1172 = vmatpush1.bf16.xpose.msra.mxu0 0
        %1173 = vmatprep.subr.bf16.mxu0 0
        %1174 = vmatpush1.bf16.xpose.msra.mxu0 0
        %1175 = vmatprep.subr.bf16.mxu0 0
        %1176 = vmatpush1.bf16.xpose.msra.mxu0 0
        %1177 = vmatprep.subr.bf16.mxu0 0
        %1178 = vmatpush1.bf16.xpose.msra.mxu0 0
        %1179 = vmatprep.subr.bf16.mxu0 0
        %1180 = vmatpush1.bf16.xpose.msra.mxu0 0
        %1181 = vmatprep.subr.bf16.mxu0 0
        %1182 = vmatpush1.bf16.xpose.msra.mxu0 0
        %1183 = vmatprep.mubr.bf16.mxu0 0
        %1184 = vmatmul.mubr.bf16.gmra.mrb[0].mxu0 %v1146
        %v1185 = vpop.f32.mrb[0].mxu0
        %v1186 = vadd.f32 %v786, %v1185
        %v1187 = vpop.f32.mrb[0].mxu0
        %v1188 = vpop.f32.mrb[0].mxu0
        %v1189 = vpop.f32.mrb[0].mxu0
        %1190 = vdwg.mxu0
        %v1191 = vsel %vm791, %v1186, -inf
        %1192 = vmax.xlane.f32.xlu0 %v1191
        %v1193 = vpop.xlane.xlu0 %1192
        %v1194 = vsub.f32 %v1186, %v1193
        %v1195 = vmul.f32 %v1194, 1.442695
        %v1196 = vpow.pop %v1195
        %v1197 = vsel %vm791, %v1196, 0.0
        %1198 = vadd.xlane.f32.xlu0 %v1197
        %v1199 = vpop.xlane.xlu0 %1198
        %v1200 = vrcp.pop %v1199
        %v1201 = vmul.f32 %v1196, %v1200
        %v1202 = vpack.c.bf16 %v1201, %v1201
        %1203 = vrot.lane.b32.xlu0 %v780, 40
        %v1204 = vpop.permute.xlu0 %1203
        %v1206 = vsel %vm791, %v1202, 0
        %v1209 = vsel %vm855, %v1204, 0
        %1211 = vmatprep.subr.bf16.mxu0 0
        %1212 = vmatpush1.bf16.msra.mxu0 %v1209
        %1213 = vmatprep.subr.bf16.mxu0 0
        %1214 = vmatpush1.bf16.msra.mxu0 0
        %1215 = vmatprep.subr.bf16.mxu0 0
        %1216 = vmatpush1.bf16.msra.mxu0 0
        %1217 = vmatprep.subr.bf16.mxu0 0
        %1218 = vmatpush1.bf16.msra.mxu0 0
        %1219 = vmatprep.subr.bf16.mxu0 0
        %1220 = vmatpush1.bf16.msra.mxu0 0
        %1221 = vmatprep.subr.bf16.mxu0 0
        %1222 = vmatpush1.bf16.msra.mxu0 0
        %1223 = vmatprep.subr.bf16.mxu0 0
        %1224 = vmatpush1.bf16.msra.mxu0 0
        %1225 = vmatprep.subr.bf16.mxu0 0
        %1226 = vmatpush1.bf16.msra.mxu0 0
        %1227 = vmatprep.subr.bf16.mxu0 0
        %1228 = vmatpush1.bf16.msra.mxu0 0
        %1229 = vmatprep.subr.bf16.mxu0 0
        %1230 = vmatpush1.bf16.msra.mxu0 0
        %1231 = vmatprep.subr.bf16.mxu0 0
        %1232 = vmatpush1.bf16.msra.mxu0 0
        %1233 = vmatprep.subr.bf16.mxu0 0
        %1234 = vmatpush1.bf16.msra.mxu0 0
        %1235 = vmatprep.subr.bf16.mxu0 0
        %1236 = vmatpush1.bf16.msra.mxu0 0
        %1237 = vmatprep.subr.bf16.mxu0 0
        %1238 = vmatpush1.bf16.msra.mxu0 0
        %1239 = vmatprep.subr.bf16.mxu0 0
        %1240 = vmatpush1.bf16.msra.mxu0 0
        %1241 = vmatprep.subr.bf16.mxu0 0
        %1242 = vmatpush1.bf16.msra.mxu0 0
        %1243 = vmatprep.mubr.bf16.mxu0 0
        %1244 = vmatmul.mubr.bf16.gmra.mrb[0].mxu0 %v1206
        %v1245 = vpop.f32.mrb[0].mxu0
        %v1246 = vadd.f32 0.0, %v1245
        %v1247 = vpop.f32.mrb[0].mxu0
        %v1248 = vpop.f32.mrb[0].mxu0
        %v1249 = vpop.f32.mrb[0].mxu0
        %1250 = vdwg.mxu0
        %v1251 = vpack.c.bf16 %v1246, %v1246
        %v1253 = vunpack.c.l.b16 %v1251
        %v1254 = vpack.c.b16 %v1253, %v1253
        %1255 = vrot.lane.b32.xlu0 %v1254, 24
        %v1256 = vpop.permute.xlu0 %1255
        %vm1258 = vcmask 257216
        %1259 = vst.msk [vmem:[#allocation2] sm:$0xf] %vm1258, %v1256
        %v1260 = vld [vmem:[#allocation2] sm:$0xf]
        %v1261 = vld [vmem:[%s669] sm:$0xf]
        %v1262 = vld [vmem:[%s669 + $0x4] sm:$0xf]
        %v1263 = vld [vmem:[%s669 + $0x8] sm:$0xf]
        %v1264 = vld [vmem:[%s669 + $0xc] sm:$0xf]
        %v1265 = vld [vmem:[%s672] sm:$0x1]
        %v1267 = vlaneseq
        %v1268 = vshrl.u32 %v1267, 7
        %v1269 = vsub.s32 0, %v1268
        %v1270 = vrot.slane %v1265, %v1269
        %v1276 = vunpack.c.l.b16 %v1261
        %v1277 = vunpack.c.l.b16 %v1262
        %v1278 = vunpack.c.l.b16 %v1263
        %v1279 = vunpack.c.l.b16 %v1264
        %v1280 = vpack.c.b16 %v1277, %v1276
        %v1281 = vpack.c.b16 %v1279, %v1278
        %v1285 = vsel %vm734, %v1260, 0
        %1287 = vmatprep.subr.bf16.mxu0 0
        %1288 = vmatpush1.bf16.msra.mxu0 %v1280
        %1289 = vmatprep.subr.bf16.mxu0 0
        %1290 = vmatpush1.bf16.msra.mxu0 %v1281
        %1291 = vmatprep.subr.bf16.mxu0 0
        %1292 = vmatpush1.bf16.msra.mxu0 0
        %1293 = vmatprep.subr.bf16.mxu0 0
        %1294 = vmatpush1.bf16.msra.mxu0 0
        %1295 = vmatprep.subr.bf16.mxu0 0
        %1296 = vmatpush1.bf16.msra.mxu0 0
        %1297 = vmatprep.subr.bf16.mxu0 0
        %1298 = vmatpush1.bf16.msra.mxu0 0
        %1299 = vmatprep.subr.bf16.mxu0 0
        %1300 = vmatpush1.bf16.msra.mxu0 0
        %1301 = vmatprep.subr.bf16.mxu0 0
        %1302 = vmatpush1.bf16.msra.mxu0 0
        %1303 = vmatprep.subr.bf16.mxu0 0
        %1304 = vmatpush1.bf16.msra.mxu0 0
        %1305 = vmatprep.subr.bf16.mxu0 0
        %1306 = vmatpush1.bf16.msra.mxu0 0
        %1307 = vmatprep.subr.bf16.mxu0 0
        %1308 = vmatpush1.bf16.msra.mxu0 0
        %1309 = vmatprep.subr.bf16.mxu0 0
        %1310 = vmatpush1.bf16.msra.mxu0 0
        %1311 = vmatprep.subr.bf16.mxu0 0
        %1312 = vmatpush1.bf16.msra.mxu0 0
        %1313 = vmatprep.subr.bf16.mxu0 0
        %1314 = vmatpush1.bf16.msra.mxu0 0
        %1315 = vmatprep.subr.bf16.mxu0 0
        %1316 = vmatpush1.bf16.msra.mxu0 0
        %1317 = vmatprep.subr.bf16.mxu0 0
        %1318 = vmatpush1.bf16.msra.mxu0 0
        %1319 = vmatprep.mubr.bf16.mxu0 0
        %1320 = vmatmul.mubr.bf16.gmra.mrb[0].mxu0 %v1285
        %v1321 = vpop.f32.mrb[0].mxu0
        %v1322 = vadd.f32 %v1270, %v1321
        %v1323 = vpop.f32.mrb[0].mxu0
        %v1324 = vpop.f32.mrb[0].mxu0
        %v1325 = vpop.f32.mrb[0].mxu0
        %1326 = vdwg.mxu0
        %v1327 = vadd.f32 %v709, %v1322
        %v1328 = vld [vmem:[%s691] sm:$0x1]
        %v1329 = vld [vmem:[%s694] sm:$0x1]
        %v1330 = vsel %vm734, %v1327, 0.0
        %1331 = vadd.xlane.f32.xlu0 %v1330
        %v1332 = vpop.xlane.xlu0 %1331
        %v1333 = vrcp.pop 32.0
        %v1334 = vmul.f32 %v1332, %v1333
        %v1335 = vsub.f32 %v1327, %v1334
        %v1336 = vmul.f32 %v1335, %v1335
        %v1337 = vsel %vm734, %v1336, 0.0
        %1338 = vadd.xlane.f32.xlu0 %v1337
        %v1339 = vpop.xlane.xlu0 %1338
        %v1340 = vmul.f32 %v1339, %v1333
        %v1341 = vadd.f32 %v1340, 1e-05
        %v1342 = vrsqrt.pop %v1341
        %v1343 = vmul.f32 %v1335, %v1342
        %v1345 = vlaneseq
        %v1346 = vshrl.u32 %v1345, 7
        %v1347 = vsub.s32 0, %v1346
        %v1348 = vrot.slane %v1328, %v1347
        %v1350 = vmul.f32 %v1343, %v1348
        %v1352 = vlaneseq
        %v1353 = vshrl.u32 %v1352, 7
        %v1354 = vsub.s32 0, %v1353
        %v1355 = vrot.slane %v1329, %v1354
        %v1357 = vadd.f32 %v1350, %v1355
        %v1358 = vpack.c.bf16 %v1357, %v1357
        %v1359 = vld [vmem:[%s677] sm:$0xf]
        %v1360 = vld [vmem:[%s677 + $0x4] sm:$0xf]
        %v1361 = vld [vmem:[%s677 + $0x8] sm:$0xf]
        %v1362 = vld [vmem:[%s677 + $0xc] sm:$0xf]
        %v1363 = vld [vmem:[%s680] sm:$0x1]
        %v1365 = vlaneseq
        %v1366 = vshrl.u32 %v1365, 7
        %v1367 = vsub.s32 0, %v1366
        %v1368 = vrot.slane %v1363, %v1367
        %v1374 = vunpack.c.l.b16 %v1359
        %v1375 = vunpack.c.l.b16 %v1360
        %v1376 = vunpack.c.l.b16 %v1361
        %v1377 = vunpack.c.l.b16 %v1362
        %v1378 = vpack.c.b16 %v1375, %v1374
        %v1379 = vpack.c.b16 %v1377, %v1376
        %v1383 = vsel %vm734, %v1358, 0
        %1385 = vmatprep.subr.bf16.mxu0 0
        %1386 = vmatpush1.bf16.msra.mxu0 %v1378
        %1387 = vmatprep.subr.bf16.mxu0 0
        %1388 = vmatpush1.bf16.msra.mxu0 %v1379
        %1389 = vmatprep.subr.bf16.mxu0 0
        %1390 = vmatpush1.bf16.msra.mxu0 0
        %1391 = vmatprep.subr.bf16.mxu0 0
        %1392 = vmatpush1.bf16.msra.mxu0 0
        %1393 = vmatprep.subr.bf16.mxu0 0
        %1394 = vmatpush1.bf16.msra.mxu0 0
        %1395 = vmatprep.subr.bf16.mxu0 0
        %1396 = vmatpush1.bf16.msra.mxu0 0
        %1397 = vmatprep.subr.bf16.mxu0 0
        %1398 = vmatpush1.bf16.msra.mxu0 0
        %1399 = vmatprep.subr.bf16.mxu0 0
        %1400 = vmatpush1.bf16.msra.mxu0 0
        %1401 = vmatprep.subr.bf16.mxu0 0
        %1402 = vmatpush1.bf16.msra.mxu0 0
        %1403 = vmatprep.subr.bf16.mxu0 0
        %1404 = vmatpush1.bf16.msra.mxu0 0
        %1405 = vmatprep.subr.bf16.mxu0 0
        %1406 = vmatpush1.bf16.msra.mxu0 0
        %1407 = vmatprep.subr.bf16.mxu0 0
        %1408 = vmatpush1.bf16.msra.mxu0 0
        %1409 = vmatprep.subr.bf16.mxu0 0
        %1410 = vmatpush1.bf16.msra.mxu0 0
        %1411 = vmatprep.subr.bf16.mxu0 0
        %1412 = vmatpush1.bf16.msra.mxu0 0
        %1413 = vmatprep.subr.bf16.mxu0 0
        %1414 = vmatpush1.bf16.msra.mxu0 0
        %1415 = vmatprep.subr.bf16.mxu0 0
        %1416 = vmatpush1.bf16.msra.mxu0 0
        %1417 = vmatprep.mubr.bf16.mxu0 0
        %1418 = vmatmul.mubr.bf16.gmra.mrb[0].mxu0 %v1383
        %v1419 = vpop.f32.mrb[0].mxu0
        %v1420 = vadd.f32 %v1368, %v1419
        %v1421 = vpop.f32.mrb[0].mxu0
        %v1422 = vpop.f32.mrb[0].mxu0
        %v1423 = vpop.f32.mrb[0].mxu0
        %1424 = vdwg.mxu0
        %v1425 = vmax.f32 %v1420, 0.0
        %v1426 = vpack.c.bf16 %v1425, %v1425
        %v1427 = vld [vmem:[%s685] sm:$0xf]
        %v1428 = vld [vmem:[%s685 + $0x4] sm:$0xf]
        %v1429 = vld [vmem:[%s685 + $0x8] sm:$0xf]
        %v1430 = vld [vmem:[%s685 + $0xc] sm:$0xf]
        %v1431 = vld [vmem:[%s685 + $0x10] sm:$0xf]
        %v1432 = vld [vmem:[%s685 + $0x14] sm:$0xf]
        %v1433 = vld [vmem:[%s685 + $0x18] sm:$0xf]
        %v1434 = vld [vmem:[%s685 + $0x1c] sm:$0xf]
        %v1435 = vld [vmem:[%s688] sm:$0x1]
        %v1437 = vlaneseq
        %v1438 = vshrl.u32 %v1437, 7
        %v1439 = vsub.s32 0, %v1438
        %v1440 = vrot.slane %v1435, %v1439
        %v1450 = vunpack.c.l.b16 %v1427
        %v1451 = vunpack.c.l.b16 %v1428
        %v1452 = vunpack.c.l.b16 %v1429
        %v1453 = vunpack.c.l.b16 %v1430
        %v1454 = vunpack.c.l.b16 %v1431
        %v1455 = vunpack.c.l.b16 %v1432
        %v1456 = vunpack.c.l.b16 %v1433
        %v1457 = vunpack.c.l.b16 %v1434
        %v1458 = vpack.c.b16 %v1451, %v1450
        %v1459 = vpack.c.b16 %v1453, %v1452
        %v1460 = vpack.c.b16 %v1455, %v1454
        %v1461 = vpack.c.b16 %v1457, %v1456
        %vm1466 = vcmask 523264
        %v1468 = vsel %vm1466, %v1426, 0
        %1470 = vmatprep.subr.bf16.mxu0 0
        %1471 = vmatpush1.bf16.msra.mxu0 %v1458
        %1472 = vmatprep.subr.bf16.mxu0 0
        %1473 = vmatpush1.bf16.msra.mxu0 %v1459
        %1474 = vmatprep.subr.bf16.mxu0 0
        %1475 = vmatpush1.bf16.msra.mxu0 %v1460
        %1476 = vmatprep.subr.bf16.mxu0 0
        %1477 = vmatpush1.bf16.msra.mxu0 %v1461
        %1478 = vmatprep.subr.bf16.mxu0 0
        %1479 = vmatpush1.bf16.msra.mxu0 0
        %1480 = vmatprep.subr.bf16.mxu0 0
        %1481 = vmatpush1.bf16.msra.mxu0 0
        %1482 = vmatprep.subr.bf16.mxu0 0
        %1483 = vmatpush1.bf16.msra.mxu0 0
        %1484 = vmatprep.subr.bf16.mxu0 0
        %1485 = vmatpush1.bf16.msra.mxu0 0
        %1486 = vmatprep.subr.bf16.mxu0 0
        %1487 = vmatpush1.bf16.msra.mxu0 0
        %1488 = vmatprep.subr.bf16.mxu0 0
        %1489 = vmatpush1.bf16.msra.mxu0 0
        %1490 = vmatprep.subr.bf16.mxu0 0
        %1491 = vmatpush1.bf16.msra.mxu0 0
        %1492 = vmatprep.subr.bf16.mxu0 0
        %1493 = vmatpush1.bf16.msra.mxu0 0
        %1494 = vmatprep.subr.bf16.mxu0 0
        %1495 = vmatpush1.bf16.msra.mxu0 0
        %1496 = vmatprep.subr.bf16.mxu0 0
        %1497 = vmatpush1.bf16.msra.mxu0 0
        %1498 = vmatprep.subr.bf16.mxu0 0
        %1499 = vmatpush1.bf16.msra.mxu0 0
        %1500 = vmatprep.subr.bf16.mxu0 0
        %1501 = vmatpush1.bf16.msra.mxu0 0
        %1502 = vmatprep.mubr.bf16.mxu0 0
        %1503 = vmatmul.mubr.bf16.gmra.mrb[0].mxu0 %v1468
        %v1504 = vpop.f32.mrb[0].mxu0
        %v1505 = vadd.f32 %v1440, %v1504
        %v1506 = vpop.f32.mrb[0].mxu0
        %v1507 = vpop.f32.mrb[0].mxu0
        %v1508 = vpop.f32.mrb[0].mxu0
        %1509 = vdwg.mxu0
        %v1510 = vadd.f32 %v1357, %v1505
        %v1511 = vld [vmem:[%s697] sm:$0x1]
        %v1512 = vld [vmem:[%s700] sm:$0x1]
        %v1513 = vsel %vm734, %v1510, 0.0
        %1514 = vadd.xlane.f32.xlu0 %v1513
        %v1515 = vpop.xlane.xlu0 %1514
        %v1516 = vmul.f32 %v1515, %v1333
        %v1517 = vsub.f32 %v1510, %v1516
        %v1518 = vmul.f32 %v1517, %v1517
        %v1519 = vsel %vm734, %v1518, 0.0
        %1520 = vadd.xlane.f32.xlu0 %v1519
        %v1521 = vpop.xlane.xlu0 %1520
        %v1522 = vmul.f32 %v1521, %v1333
        %v1523 = vadd.f32 %v1522, 1e-05
        %v1524 = vrsqrt.pop %v1523
        %v1525 = vmul.f32 %v1517, %v1524
        %v1527 = vlaneseq
        %v1528 = vshrl.u32 %v1527, 7
        %v1529 = vsub.s32 0, %v1528
        %v1530 = vrot.slane %v1511, %v1529
        %v1532 = vmul.f32 %v1525, %v1530
        %v1534 = vlaneseq
        %v1535 = vshrl.u32 %v1534, 7
        %v1536 = vsub.s32 0, %v1535
        %v1537 = vrot.slane %v1512, %v1536
        %v1539 = vadd.f32 %v1532, %v1537
        %1540 = vst.msk [vmem:[%s653] sm:$0xff] %vm734, %v1539
        %s1541 = sand.u32 %s415, 1
        %s1542 = scalar_lea.sflag [#allocation5], %s1541
        %s1543 = sand.u32 %s415, 1
        %s1544 = smul.addr %s1543, 8
        %s1545 = scalar_lea.vmem [#allocation6], %s1544
        // Predicated region
        $region85: #{tpu_custom_call.1} parent=75 // pred_check
          %p1546 = pneg %p425
        $region86: #{tpu_custom_call.1} parent=75 // pred_check_branch
          %1548 = sbr.rel (%p1546) target = $region88
        $region87: #{tpu_custom_call.1} parent=75 // pred_region
          %s1550 = ssub.s32 128, 128
          %1551 = vsyncadd %s1542, %s1550
          %s1552 = smul.addr %s35, 128
          %s1553 = scalar_lea.hbm %s14, %s1552
          %s1555 = sshll.u32 %s1545, 4
          %s1556 = int_to_ptr.vmem [resolvable:$true] %s1555
          %1558 = dma.vmem_to_hbm [thread:$0]  %s1556, 128, %s1553, %s1542
        $region88: #{tpu_custom_call.1} parent=75 // pred_fallthru
          _
      $region76: #{tpu_custom_call.1} parent=5 // pred_fallthru
        _
      %p1559 = scmp.le.s32.totalorder 2, %s26
      // Predicated region
      $region89: #{tpu_custom_call.1} parent=5 // pred_check
        %p1560 = pneg %p1559
      $region90: #{tpu_custom_call.1} parent=5 // pred_check_branch
        %1562 = sbr.rel (%p1560) target = $region92
      $region91: #{tpu_custom_call.1} parent=5 // pred_region
        %s1563 = ssub.s32 %s26, 2
        // Predicated region
        $region93: #{tpu_custom_call.1} parent=91 // pred_check
          %p1564 = pneg %p431
        $region94: #{tpu_custom_call.1} parent=91 // pred_check_branch
          %1566 = sbr.rel (%p1564) target = $region96
        $region95: #{tpu_custom_call.1} parent=91 // pred_region
          %s1567 = sand.u32 %s416, 1
          %s1568 = scalar_lea.sflag [#allocation5], %s1567
          %s1569 = sand.u32 %s416, 1
          %s1570 = smul.addr %s1569, 8
          %s1571 = scalar_lea.vmem [#allocation6], %s1570
          %1572 = dma.done %s1568, 128
        $region96: #{tpu_custom_call.1} parent=91 // pred_fallthru
          _
      $region92: #{tpu_custom_call.1} parent=5 // pred_fallthru
        _
    $region6: #{tpu_custom_call.1} parent=1 // loop_footer
      %s30 = sadd.s32 1, %s26
    $region7: #{tpu_custom_call.1} parent=1 // loop_footer_branch
      %25 = sbr.rel target = $region3
    $region8: #{tpu_custom_call.1} parent=1 // loop_exit
      _
    %1573 = vsyncpa [#allocation4], 1
    %s1574 = scalar_lea.sflag [#allocation4], 1
    %1575 = vsyncpa %s1574, 1
    %1576 = vsyncpa [#allocation5], 1
    %s1577 = scalar_lea.sflag [#allocation5], 1
    %1578 = vsyncpa %s1577, 1

</llo_original>
